<compile_context>
chip_gen: v7x
topology: tpu7x:2x2x1
jax: 0.10.0
libtpu: 0.0.40
codegen_flags: <defaults>
</compile_context>

<pallas_src>
import functools
import math

import jax
import jax.numpy as jnp
from jax import lax
from jax.experimental import pallas as pl
from jax.experimental.pallas import tpu as pltpu

_VMEM = pl.BlockSpec(memory_space=pltpu.MemorySpace.VMEM)
_BN_EPS = 1e-5
_OUT_PAD = 128          # lane-dense packed output width: [dy | step | zeros]


# ----------------------------------------------------------------------------
# In-kernel helpers (traced only)
# ----------------------------------------------------------------------------
def _bn_relu(h, gamma, beta):
    # BatchNorm1d, training-mode (biased) batch statistics, fused with ReLU.
    # TODO(synk): if the PyTorch module runs in eval(), running stats are
    # needed instead of batch stats.
    mean = jnp.mean(h, axis=0, keepdims=True)
    var = jnp.mean(h * h, axis=0, keepdims=True) - mean * mean
    hn = (h - mean) * lax.rsqrt(var + _BN_EPS)
    return jnp.maximum(hn * gamma + beta, 0.0)


# ----------------------------------------------------------------------------
# Fused kernel: the entire StyleLSTM.forward
# ----------------------------------------------------------------------------
def _style_lstm_kernel(
        traj_ref, c_ref,
        wim_ref, vim_ref,          # input MLP:  weight, [b1; gamma; beta]
        wl_ref, vl_ref,            # LSTM slab,  [b_in(folded); b1]
        wm_ref, vm_ref,            # main:       weight, [gamma/beta proj; b]
        wh_ref, vh_ref,            # head:       weight slab, bias/gamma/beta slab
        out_ref,
        *, T, B, H, c_dim, style_dim, n_main):
    f32, bf16 = jnp.float32, jnp.bfloat16
    H2, H4, H8 = 2 * H, 4 * H, 8 * H

    # ---- input MLP (Linear -> BN -> ReLU).  The second Linear was folded
    # into the hoisted LSTM layer-0 input projection at init time.
    x = traj_ref[...]                                               # (T*B, Din)
    vim = vim_ref[...]
    h = jnp.dot(x, wim_ref[...], preferred_element_type=f32) + vim[0:1, :]
    h = _bn_relu(h, vim[1:2, :], vim[2:3, :])                       # (T*B, H)

    # ---- hoisted, folded layer-0 input projection (off the serial chain)
    wl = wl_ref[...]
    vl = vl_ref[...]
    gates_in0 = (jnp.dot(h, wl[0:H, 0:H4], preferred_element_type=f32)
                 + vl[0:1, :])                                      # (T*B, 4H)
    lb1 = vl[1:2, :]                                                # (1, 4H)
    whh_blk = wl[H:3 * H, :].astype(bf16)          # (2H, 8H) blkdiag(whh0,whh1)
    wih1 = wl[3 * H:4 * H, 0:H4].astype(bf16)      # (H, 4H)

    # ---- 2-layer LSTM, zero initial state; only y[-1] (top layer, last step)
    # is needed.  g-gate columns were pre-scaled by 2 at init, so
    # tanh(x) = 2*sigmoid(2x) - 1 lets one sigmoid cover all four gates.
    def gates(g, c_prev):
        sg = jax.nn.sigmoid(g)
        i = sg[:, 0:H]
        f = sg[:, H:2 * H]
        gg = 2.0 * sg[:, 2 * H:3 * H] - 1.0
        o = sg[:, 3 * H:H4]
        c_new = f * c_prev + i * gg
        return o * jnp.tanh(c_new), c_new

    zeros_bh = jnp.zeros((B, H), f32)
    h1, c1, h2, c2 = zeros_bh, zeros_bh, zeros_bh, zeros_bh
    for t in range(T):                       # fully unrolled, static slices
        # one MXU push for both recurrent projections
        h12 = jnp.concatenate([h1, h2], axis=-1).astype(bf16)       # (B, 2H)
        rec = jnp.dot(h12, whh_blk, preferred_element_type=f32)     # (B, 8H)
        g0 = gates_in0[t * B:(t + 1) * B, :] + rec[:, 0:H4]
        h1, c1 = gates(g0, c1)
        g1 = (jnp.dot(h1.astype(bf16), wih1, preferred_element_type=f32)
              + rec[:, H4:H8] + lb1)
        h2, c2 = gates(g1, c2)
    y0 = h2                                                         # (B, H)

    # ---- conditioned `main` layers.
    # TODO(synk): the `layer` class is injected into StyleLSTM.__init__ and not
    # defined in the reference; implemented as a FiLM-conditioned linear block:
    #   y0 = relu(y0 @ W + b) * (1 + c @ Wg) + c @ Wb
    # gamma/beta projections for all layers are fused into ONE matmul.
    vm = vm_ref[...]
    LH = n_main * H
    cond = jnp.dot(c_ref[...], vm[0:c_dim, :], preferred_element_type=f32)
    gammas = cond[:, 0:LH]                                          # (B, L*H)
    betas = cond[:, LH:2 * LH]                                      # (B, L*H)
    mb = vm[c_dim:c_dim + 1, 0:LH]                                  # (1, L*H)
    wm = wm_ref[...]                                                # (H, L*H)
    for l in range(n_main):                  # unrolled (serial dependency)
        sl = slice(l * H, (l + 1) * H)
        hh = jnp.dot(y0, wm[:, sl], preferred_element_type=f32) + mb[:, sl]
        y0 = jnp.maximum(hh, 0.0) * (1.0 + gammas[:, sl]) + betas[:, sl]

    # ---- fused head: step_layer + output_layer share one channel-concatenated
    # first layer and one block-diagonal, lane-padded second layer.
    wh = wh_ref[...]
    vh = vh_ref[...]
    hh = jnp.dot(y0, wh[0:H, 0:H2], preferred_element_type=f32) + vh[0:1, 0:H2]
    hh = _bn_relu(hh, vh[1:2, 0:H2], vh[2:3, 0:H2])                 # (B, 2H)
    out_raw = (jnp.dot(hh, wh[H:3 * H, :], preferred_element_type=f32)
               + vh[3:4, :])                                        # (B, 128)

    lane = lax.broadcasted_iota(jnp.int32, (B, _OUT_PAD), 1)
    dy_mask = lane < style_dim
    dy_raw = jnp.where(dy_mask, out_raw, 0.0)
    sumsq = jnp.sum(dy_raw * dy_raw, axis=-1, keepdims=True)
    inv_norm = lax.rsqrt(jnp.maximum(sumsq, 1e-24))  # == 1 / max(||dy||, 1e-12)
    packed = jnp.where(
        dy_mask, out_raw * inv_norm,
        jnp.where(lane == style_dim, jax.nn.sigmoid(out_raw), 0.0))
    out_ref[...] = packed.astype(out_ref.dtype)


# ----------------------------------------------------------------------------
# Pallas wrapper
# ----------------------------------------------------------------------------
def _fused_forward(traj_flat, c, p, *, T, B, H, c_dim, style_dim, n_main):
    kernel = functools.partial(_style_lstm_kernel, T=T, B=B, H=H, c_dim=c_dim,
                               style_dim=style_dim, n_main=n_main)
    args = (traj_flat, c,
            p["w_in_mlp"], p["v_in_mlp"],
            p["w_lstm"], p["v_lstm"],
            p["w_main"], p["v_main"],
            p["w_head"], p["v_head"])
    return pl.pallas_call(
        kernel,
        out_shape=jax.ShapeDtypeStruct((B, _OUT_PAD), jnp.float32),
        in_specs=[_VMEM] * len(args),
        out_specs=_VMEM,
    )(*args)


def style_lstm_forward(trajectory, c, params):
    """trajectory: (T, B, n_styles, style_dim)  (== torch.stack(trajectory))
       c:          (B, c_dim)
       returns (dy: (B, 1, style_dim), step_size: (B, 1))"""
    T, B = trajectory.shape[0], trajectory.shape[1]
    traj_flat = trajectory.reshape(T * B, -1)      # .flatten(-2).view(-1, D)
    style_dim, H, c_dim, n_main = params["dims"]
    packed = _fused_forward(traj_flat, c, params, T=T, B=B, H=H, c_dim=c_dim,
                            style_dim=style_dim, n_main=n_main)
    dy = packed[:, :style_dim][:, None, :]         # F.normalize(...).unsqueeze(1)
    step_size = packed[:, style_dim:style_dim + 1]
    return dy, step_size


# ----------------------------------------------------------------------------
# Deterministic parameter init + slab packing (shapes from StyleLSTM.__init__)
# ----------------------------------------------------------------------------
def _uniform(key, shape, scale):
    return jax.random.uniform(key, shape, jnp.float32, -scale, scale)


def _init_mlp(key, in_c, hid_c, out_c):
    """PyTorch mlp(in_c, hid_c, out_c): Linear -> BatchNorm1d -> ReLU -> Linear.
    Weights pre-transposed for x @ W."""
    k1, k2, k3, k4 = jax.random.split(key, 4)
    s1, s2 = 1.0 / math.sqrt(in_c), 1.0 / math.sqrt(hid_c)
    w1 = _uniform(k1, (in_c, hid_c), s1)
    b1 = _uniform(k2, (hid_c,), s1).reshape(1, -1)
    gamma = jnp.ones((1, hid_c), jnp.float32)      # BatchNorm1d default init
    beta = jnp.zeros((1, hid_c), jnp.float32)
    w2 = _uniform(k3, (hid_c, out_c), s2)
    b2 = _uniform(k4, (out_c,), s2).reshape(1, -1)
    return (w1, b1, gamma, beta, w2, b2)


def _init_lstm(key, hid_c):
    s = 1.0 / math.sqrt(hid_c)
    ks = jax.random.split(key, 8)

    def layer(kk):
        wih = _uniform(kk[0], (hid_c, 4 * hid_c), s)   # pre-transposed (x @ W)
        whh = _uniform(kk[1], (hid_c, 4 * hid_c), s)
        b_ih = _uniform(kk[2], (4 * hid_c,), s)
        b_hh = _uniform(kk[3], (4 * hid_c,), s)
        return wih, whh, (b_ih + b_hh).reshape(1, -1)

    l0 = layer(ks[0:4])
    l1 = layer(ks[4:8])
    return (*l0, *l1)


def _init_cond(key, hid_c, c_dim):
    ks = jax.random.split(key, 4)
    s, sc = 1.0 / math.sqrt(hid_c), 1.0 / math.sqrt(c_dim)
    w = _uniform(ks[0], (hid_c, hid_c), s)
    b = _uniform(ks[1], (hid_c,), s).reshape(1, -1)
    wg = _uniform(ks[2], (c_dim, hid_c), sc)
    wb = _uniform(ks[3], (c_dim, hid_c), sc)
    return (w, b, wg, wb)


def init_style_lstm(key, style_dim, hid_c, c_dim, n_styles, n_layer=0):
    H = hid_c
    ks = jax.random.split(key, 5)
    n_main = max(1, n_layer)       # __init__ always builds >= 1 `main` layer

    # ---- input MLP
    iw1, ib1, ig, ibt, iw2, ib2 = _init_mlp(ks[1], style_dim * n_styles, H, H)
    v_in_mlp = jnp.concatenate([ib1, ig, ibt], axis=0)              # (3, H)

    # ---- LSTM raw params
    wih0, whh0, b0, wih1, whh1, b1 = _init_lstm(ks[4], H)

    # tanh(x) = 2*sigmoid(2x) - 1  =>  pre-scale g-gate columns by 2 so the
    # kernel needs only one full-register sigmoid.
    def _scale_g(w):
        return w.at[:, 2 * H:3 * H].multiply(2.0)
    wih0, whh0, wih1, whh1 = map(_scale_g, (wih0, whh0, wih1, whh1))
    b0, b1 = _scale_g(b0), _scale_g(b1)

    # Fold the input-MLP second Linear into the layer-0 input projection
    # (no nonlinearity in between => exact algebraic identity).
    w_in = iw2 @ wih0                                               # (H, 4H)
    b_in = ib2 @ wih0 + b0                                          # (1, 4H)

    # LSTM weight slab (4H, 8H): [ w_in | 0 ; blkdiag(whh0, whh1) ; wih1 | 0 ]
    w_lstm = jnp.zeros((4 * H, 8 * H), jnp.float32)
    w_lstm = w_lstm.at[0:H, 0:4 * H].set(w_in)
    w_lstm = w_lstm.at[H:2 * H, 0:4 * H].set(whh0)
    w_lstm = w_lstm.at[2 * H:3 * H, 4 * H:8 * H].set(whh1)
    w_lstm = w_lstm.at[3 * H:4 * H, 0:4 * H].set(wih1)
    v_lstm = jnp.concatenate([b_in, b1], axis=0)                    # (2, 4H)

    # ---- `main` layers, stacked along lanes so conditioning is one matmul.
    main_raw = [_init_cond(jax.random.fold_in(ks[0], i), H, c_dim)
                for i in range(n_main)]
    w_main = jnp.concatenate([m[0] for m in main_raw], axis=1)      # (H, L*H)
    mb = jnp.concatenate([m[1] for m in main_raw], axis=1)          # (1, L*H)
    mwg = jnp.concatenate([m[2] for m in main_raw], axis=1)         # (c_dim, L*H)
    mwb = jnp.concatenate([m[3] for m in main_raw], axis=1)         # (c_dim, L*H)
    LH = n_main * H
    v_main = jnp.zeros((c_dim + 1, 2 * LH), jnp.float32)
    v_main = v_main.at[0:c_dim, 0:LH].set(mwg)
    v_main = v_main.at[0:c_dim, LH:2 * LH].set(mwb)
    v_main = v_main.at[c_dim, 0:LH].set(mb[0])

    # ---- fused head: step_layer + output_layer
    #  - first layer channel-concatenated (BN stats are per-channel, so this is
    #    numerically identical to the two separate BatchNorm1d layers)
    #  - second layer block-diagonal and lane-padded to (2H, 128) so the kernel
    #    emits one lane-dense output slab [dy | step | zeros].
    ow1, ob1, og, obt, ow2, ob2 = _init_mlp(ks[2], H, H, style_dim)
    sw1, sb1, sg, sbt, sw2, sb2 = _init_mlp(ks[3], H, H, 1)
    w_head = jnp.zeros((3 * H, _OUT_PAD), jnp.float32)
    w_head = w_head.at[0:H, 0:H].set(ow1)
    w_head = w_head.at[0:H, H:2 * H].set(sw1)
    w_head = w_head.at[H:2 * H, 0:style_dim].set(ow2)
    w_head = w_head.at[2 * H:3 * H, style_dim].set(sw2[:, 0])
    v_head = jnp.zeros((4, _OUT_PAD), jnp.float32)
    v_head = v_head.at[0, 0:H].set(ob1[0]).at[0, H:2 * H].set(sb1[0])
    v_head = v_head.at[1, 0:H].set(og[0]).at[1, H:2 * H].set(sg[0])
    v_head = v_head.at[2, 0:H].set(obt[0]).at[2, H:2 * H].set(sbt[0])
    v_head = v_head.at[3, 0:style_dim].set(ob2[0])
    v_head = v_head.at[3, style_dim].set(sb2[0, 0])

    return {
        "w_in_mlp": iw1, "v_in_mlp": v_in_mlp,
        "w_lstm": w_lstm, "v_lstm": v_lstm,
        "w_main": w_main, "v_main": v_main,
        "w_head": w_head, "v_head": v_head,
        "dims": (style_dim, H, c_dim, n_main),
    }


# ----------------------------------------------------------------------------
if __name__ == "__main__":
    T, B = 8, 4
    n_styles, style_dim = 2, 8
    hid_c, c_dim = 32, 8

    key = jax.random.PRNGKey(0)
    k_par, k_traj, k_c = jax.random.split(key, 3)

    params = init_style_lstm(k_par, style_dim, hid_c, c_dim, n_styles, n_layer=0)
    trajectory = jax.random.normal(k_traj, (T, B, n_styles, style_dim), jnp.float32)
    c = jax.random.normal(k_c, (B, c_dim), jnp.float32)

    dy, step_size = style_lstm_forward(trajectory, c, params)
    dy = jax.block_until_ready(dy)
    step_size = jax.block_until_ready(step_size)

    assert dy.shape == (B, 1, style_dim), dy.shape
    assert step_size.shape == (B, 1), step_size.shape
    assert bool(jnp.all(jnp.isfinite(dy))) and bool(jnp.all(jnp.isfinite(step_size)))
    assert bool(jnp.all((step_size > 0.0) & (step_size < 1.0)))
    norms = jnp.sqrt(jnp.sum(dy[:, 0, :] ** 2, axis=-1))
    assert bool(jnp.all(jnp.abs(norms - 1.0) < 1e-4)), norms

    print("KERNEL_OK")
</pallas_src>

<mosaic_0001>
module attributes {stable_mosaic.version = 11 : i64} {
  func.func @_style_lstm_kernel(%arg0: memref<32x16xf32, #tpu.memory_space<vmem>>, %arg1: memref<4x8xf32, #tpu.memory_space<vmem>>, %arg2: memref<16x32xf32, #tpu.memory_space<vmem>>, %arg3: memref<3x32xf32, #tpu.memory_space<vmem>>, %arg4: memref<128x256xf32, #tpu.memory_space<vmem>>, %arg5: memref<2x128xf32, #tpu.memory_space<vmem>>, %arg6: memref<32x32xf32, #tpu.memory_space<vmem>>, %arg7: memref<9x64xf32, #tpu.memory_space<vmem>>, %arg8: memref<96x128xf32, #tpu.memory_space<vmem>>, %arg9: memref<4x128xf32, #tpu.memory_space<vmem>>, %arg10: memref<4x128xf32, #tpu.memory_space<vmem>>) attributes {dimension_semantics = [], scalar_prefetch = 0 : i64, scratch_operands = 0 : i64, tpu.core_type = #tpu.core_type<tc>} {
    %c0 = arith.constant 0 : index
    %c0_0 = arith.constant 0 : index
    %0 = vector.load %arg0[%c0, %c0_0] : memref<32x16xf32, #tpu.memory_space<vmem>>, vector<32x16xf32>
    %c0_1 = arith.constant 0 : index
    %c0_2 = arith.constant 0 : index
    %1 = vector.load %arg3[%c0_1, %c0_2] : memref<3x32xf32, #tpu.memory_space<vmem>>, vector<3x32xf32>
    %c0_3 = arith.constant 0 : index
    %c0_4 = arith.constant 0 : index
    %2 = vector.load %arg2[%c0_3, %c0_4] : memref<16x32xf32, #tpu.memory_space<vmem>>, vector<16x32xf32>
    %cst = arith.constant dense<0.000000e+00> : vector<32x32xf32>
    %3 = tpu.matmul %0, %2, %cst {dimension_numbers = #tpu.dot_dimension_numbers<[1], [0], [0], [1], [0, 0, 1, 1], [], []>} : vector<32x16xf32>, vector<16x32xf32>, vector<32x32xf32> -> vector<32x32xf32>
    %4 = vector.extract_strided_slice %1 {offsets = [0, 0], sizes = [1, 32], strides = [1, 1]} : vector<3x32xf32> to vector<1x32xf32>
    %5 = vector.broadcast %4 : vector<1x32xf32> to vector<32x32xf32>
    %6 = arith.addf %3, %5 : vector<32x32xf32>
    %7 = vector.extract_strided_slice %1 {offsets = [1, 0], sizes = [1, 32], strides = [1, 1]} : vector<3x32xf32> to vector<1x32xf32>
    %8 = vector.extract_strided_slice %1 {offsets = [2, 0], sizes = [1, 32], strides = [1, 1]} : vector<3x32xf32> to vector<1x32xf32>
    %cst_5 = arith.constant dense<0.000000e+00> : vector<32xf32>
    %9 = vector.multi_reduction <add>, %6, %cst_5 [0] : vector<32x32xf32> to vector<32xf32>
    %10 = vector.shape_cast %9 : vector<32xf32> to vector<1x32xf32>
    %cst_6 = arith.constant 3.200000e+01 : f32
    %11 = vector.broadcast %cst_6 : f32 to vector<1x32xf32>
    %12 = arith.divf %10, %11 : vector<1x32xf32>
    %13 = arith.mulf %6, %6 : vector<32x32xf32>
    %cst_7 = arith.constant dense<0.000000e+00> : vector<32xf32>
    %14 = vector.multi_reduction <add>, %13, %cst_7 [0] : vector<32x32xf32> to vector<32xf32>
    %15 = vector.shape_cast %14 : vector<32xf32> to vector<1x32xf32>
    %cst_8 = arith.constant 3.200000e+01 : f32
    %16 = vector.broadcast %cst_8 : f32 to vector<1x32xf32>
    %17 = arith.divf %15, %16 : vector<1x32xf32>
    %18 = arith.mulf %12, %12 : vector<1x32xf32>
    %19 = arith.subf %17, %18 : vector<1x32xf32>
    %20 = vector.broadcast %12 : vector<1x32xf32> to vector<32x32xf32>
    %21 = arith.subf %6, %20 : vector<32x32xf32>
    %cst_9 = arith.constant 9.99999974E-6 : f32
    %22 = vector.broadcast %cst_9 : f32 to vector<1x32xf32>
    %23 = arith.addf %19, %22 : vector<1x32xf32>
    %24 = math.rsqrt %23 : vector<1x32xf32>
    %25 = vector.broadcast %24 : vector<1x32xf32> to vector<32x32xf32>
    %26 = arith.mulf %21, %25 : vector<32x32xf32>
    %27 = vector.broadcast %7 : vector<1x32xf32> to vector<32x32xf32>
    %28 = arith.mulf %26, %27 : vector<32x32xf32>
    %29 = vector.broadcast %8 : vector<1x32xf32> to vector<32x32xf32>
    %30 = arith.addf %28, %29 : vector<32x32xf32>
    %cst_10 = arith.constant 0.000000e+00 : f32
    %31 = vector.broadcast %cst_10 : f32 to vector<32x32xf32>
    %32 = arith.maximumf %30, %31 : vector<32x32xf32>
    %c0_11 = arith.constant 0 : index
    %c0_12 = arith.constant 0 : index
    %33 = vector.load %arg4[%c0_11, %c0_12] : memref<128x256xf32, #tpu.memory_space<vmem>>, vector<128x256xf32>
    %c0_13 = arith.constant 0 : index
    %c0_14 = arith.constant 0 : index
    %34 = vector.load %arg5[%c0_13, %c0_14] : memref<2x128xf32, #tpu.memory_space<vmem>>, vector<2x128xf32>
    %35 = vector.extract_strided_slice %33 {offsets = [0, 0], sizes = [32, 128], strides = [1, 1]} : vector<128x256xf32> to vector<32x128xf32>
    %cst_15 = arith.constant dense<0.000000e+00> : vector<32x128xf32>
    %36 = tpu.matmul %32, %35, %cst_15 {dimension_numbers = #tpu.dot_dimension_numbers<[1], [0], [0], [1], [0, 0, 1, 1], [], []>} : vector<32x32xf32>, vector<32x128xf32>, vector<32x128xf32> -> vector<32x128xf32>
    %37 = vector.extract_strided_slice %34 {offsets = [0, 0], sizes = [1, 128], strides = [1, 1]} : vector<2x128xf32> to vector<1x128xf32>
    %38 = vector.broadcast %37 : vector<1x128xf32> to vector<32x128xf32>
    %39 = arith.addf %36, %38 : vector<32x128xf32>
    %40 = vector.extract_strided_slice %34 {offsets = [1, 0], sizes = [1, 128], strides = [1, 1]} : vector<2x128xf32> to vector<1x128xf32>
    %41 = vector.extract_strided_slice %33 {offsets = [32, 0], sizes = [64, 256], strides = [1, 1]} : vector<128x256xf32> to vector<64x256xf32>
    %42 = arith.truncf %41 : vector<64x256xf32> to vector<64x256xbf16>
    %43 = vector.extract_strided_slice %33 {offsets = [96, 0], sizes = [32, 128], strides = [1, 1]} : vector<128x256xf32> to vector<32x128xf32>
    %44 = arith.truncf %43 : vector<32x128xf32> to vector<32x128xbf16>
    %cst_16 = arith.constant 0.000000e+00 : f32
    %45 = vector.broadcast %cst_16 : f32 to vector<4x32xf32>
    %46 = tpu.concatenate %45, %45 in 1 : vector<4x32xf32>, vector<4x32xf32> -> vector<4x64xf32>
    %47 = arith.truncf %46 : vector<4x64xf32> to vector<4x64xbf16>
    %cst_17 = arith.constant dense<0.000000e+00> : vector<4x256xf32>
    %48 = tpu.matmul %47, %42, %cst_17 {dimension_numbers = #tpu.dot_dimension_numbers<[1], [0], [0], [1], [0, 0, 1, 1], [], []>} : vector<4x64xbf16>, vector<64x256xbf16>, vector<4x256xf32> -> vector<4x256xf32>
    %49 = vector.extract_strided_slice %39 {offsets = [0, 0], sizes = [4, 128], strides = [1, 1]} : vector<32x128xf32> to vector<4x128xf32>
    %50 = vector.extract_strided_slice %48 {offsets = [0, 0], sizes = [4, 128], strides = [1, 1]} : vector<4x256xf32> to vector<4x128xf32>
    %51 = arith.addf %49, %50 : vector<4x128xf32>
    %52 = arith.negf %51 : vector<4x128xf32>
    %53 = math.exp %52 : vector<4x128xf32>
    %cst_18 = arith.constant 1.000000e+00 : f32
    %54 = vector.broadcast %cst_18 : f32 to vector<4x128xf32>
    %55 = arith.addf %54, %53 : vector<4x128xf32>
    %56 = arith.divf %54, %55 : vector<4x128xf32>
    %57 = vector.extract_strided_slice %56 {offsets = [0, 0], sizes = [4, 32], strides = [1, 1]} : vector<4x128xf32> to vector<4x32xf32>
    %58 = vector.extract_strided_slice %56 {offsets = [0, 32], sizes = [4, 32], strides = [1, 1]} : vector<4x128xf32> to vector<4x32xf32>
    %59 = vector.extract_strided_slice %56 {offsets = [0, 64], sizes = [4, 32], strides = [1, 1]} : vector<4x128xf32> to vector<4x32xf32>
    %cst_19 = arith.constant 2.000000e+00 : f32
    %60 = vector.broadcast %cst_19 : f32 to vector<4x32xf32>
    %61 = arith.mulf %60, %59 : vector<4x32xf32>
    %cst_20 = arith.constant 1.000000e+00 : f32
    %62 = vector.broadcast %cst_20 : f32 to vector<4x32xf32>
    %63 = arith.subf %61, %62 : vector<4x32xf32>
    %64 = vector.extract_strided_slice %56 {offsets = [0, 96], sizes = [4, 32], strides = [1, 1]} : vector<4x128xf32> to vector<4x32xf32>
    %65 = arith.mulf %58, %45 : vector<4x32xf32>
    %66 = arith.mulf %57, %63 : vector<4x32xf32>
    %67 = arith.addf %65, %66 : vector<4x32xf32>
    %68 = math.tanh %67 : vector<4x32xf32>
    %69 = arith.mulf %64, %68 : vector<4x32xf32>
    %70 = arith.truncf %69 : vector<4x32xf32> to vector<4x32xbf16>
    %cst_21 = arith.constant dense<0.000000e+00> : vector<4x128xf32>
    %71 = tpu.matmul %70, %44, %cst_21 {dimension_numbers = #tpu.dot_dimension_numbers<[1], [0], [0], [1], [0, 0, 1, 1], [], []>} : vector<4x32xbf16>, vector<32x128xbf16>, vector<4x128xf32> -> vector<4x128xf32>
    %72 = vector.extract_strided_slice %48 {offsets = [0, 128], sizes = [4, 128], strides = [1, 1]} : vector<4x256xf32> to vector<4x128xf32>
    %73 = arith.addf %71, %72 : vector<4x128xf32>
    %74 = vector.broadcast %40 : vector<1x128xf32> to vector<4x128xf32>
    %75 = arith.addf %73, %74 : vector<4x128xf32>
    %76 = arith.negf %75 : vector<4x128xf32>
    %77 = math.exp %76 : vector<4x128xf32>
    %cst_22 = arith.constant 1.000000e+00 : f32
    %78 = vector.broadcast %cst_22 : f32 to vector<4x128xf32>
    %79 = arith.addf %78, %77 : vector<4x128xf32>
    %80 = arith.divf %78, %79 : vector<4x128xf32>
    %81 = vector.extract_strided_slice %80 {offsets = [0, 0], sizes = [4, 32], strides = [1, 1]} : vector<4x128xf32> to vector<4x32xf32>
    %82 = vector.extract_strided_slice %80 {offsets = [0, 32], sizes = [4, 32], strides = [1, 1]} : vector<4x128xf32> to vector<4x32xf32>
    %83 = vector.extract_strided_slice %80 {offsets = [0, 64], sizes = [4, 32], strides = [1, 1]} : vector<4x128xf32> to vector<4x32xf32>
    %cst_23 = arith.constant 2.000000e+00 : f32
    %84 = vector.broadcast %cst_23 : f32 to vector<4x32xf32>
    %85 = arith.mulf %84, %83 : vector<4x32xf32>
    %cst_24 = arith.constant 1.000000e+00 : f32
    %86 = vector.broadcast %cst_24 : f32 to vector<4x32xf32>
    %87 = arith.subf %85, %86 : vector<4x32xf32>
    %88 = vector.extract_strided_slice %80 {offsets = [0, 96], sizes = [4, 32], strides = [1, 1]} : vector<4x128xf32> to vector<4x32xf32>
    %89 = arith.mulf %82, %45 : vector<4x32xf32>
    %90 = arith.mulf %81, %87 : vector<4x32xf32>
    %91 = arith.addf %89, %90 : vector<4x32xf32>
    %92 = math.tanh %91 : vector<4x32xf32>
    %93 = arith.mulf %88, %92 : vector<4x32xf32>
    %94 = tpu.concatenate %69, %93 in 1 : vector<4x32xf32>, vector<4x32xf32> -> vector<4x64xf32>
    %95 = arith.truncf %94 : vector<4x64xf32> to vector<4x64xbf16>
    %cst_25 = arith.constant dense<0.000000e+00> : vector<4x256xf32>
    %96 = tpu.matmul %95, %42, %cst_25 {dimension_numbers = #tpu.dot_dimension_numbers<[1], [0], [0], [1], [0, 0, 1, 1], [], []>} : vector<4x64xbf16>, vector<64x256xbf16>, vector<4x256xf32> -> vector<4x256xf32>
    %97 = vector.extract_strided_slice %39 {offsets = [4, 0], sizes = [4, 128], strides = [1, 1]} : vector<32x128xf32> to vector<4x128xf32>
    %98 = vector.extract_strided_slice %96 {offsets = [0, 0], sizes = [4, 128], strides = [1, 1]} : vector<4x256xf32> to vector<4x128xf32>
    %99 = arith.addf %97, %98 : vector<4x128xf32>
    %100 = arith.negf %99 : vector<4x128xf32>
    %101 = math.exp %100 : vector<4x128xf32>
    %cst_26 = arith.constant 1.000000e+00 : f32
    %102 = vector.broadcast %cst_26 : f32 to vector<4x128xf32>
    %103 = arith.addf %102, %101 : vector<4x128xf32>
    %104 = arith.divf %102, %103 : vector<4x128xf32>
    %105 = vector.extract_strided_slice %104 {offsets = [0, 0], sizes = [4, 32], strides = [1, 1]} : vector<4x128xf32> to vector<4x32xf32>
    %106 = vector.extract_strided_slice %104 {offsets = [0, 32], sizes = [4, 32], strides = [1, 1]} : vector<4x128xf32> to vector<4x32xf32>
    %107 = vector.extract_strided_slice %104 {offsets = [0, 64], sizes = [4, 32], strides = [1, 1]} : vector<4x128xf32> to vector<4x32xf32>
    %cst_27 = arith.constant 2.000000e+00 : f32
    %108 = vector.broadcast %cst_27 : f32 to vector<4x32xf32>
    %109 = arith.mulf %108, %107 : vector<4x32xf32>
    %cst_28 = arith.constant 1.000000e+00 : f32
    %110 = vector.broadcast %cst_28 : f32 to vector<4x32xf32>
    %111 = arith.subf %109, %110 : vector<4x32xf32>
    %112 = vector.extract_strided_slice %104 {offsets = [0, 96], sizes = [4, 32], strides = [1, 1]} : vector<4x128xf32> to vector<4x32xf32>
    %113 = arith.mulf %106, %67 : vector<4x32xf32>
    %114 = arith.mulf %105, %111 : vector<4x32xf32>
    %115 = arith.addf %113, %114 : vector<4x32xf32>
    %116 = math.tanh %115 : vector<4x32xf32>
    %117 = arith.mulf %112, %116 : vector<4x32xf32>
    %118 = arith.truncf %117 : vector<4x32xf32> to vector<4x32xbf16>
    %cst_29 = arith.constant dense<0.000000e+00> : vector<4x128xf32>
    %119 = tpu.matmul %118, %44, %cst_29 {dimension_numbers = #tpu.dot_dimension_numbers<[1], [0], [0], [1], [0, 0, 1, 1], [], []>} : vector<4x32xbf16>, vector<32x128xbf16>, vector<4x128xf32> -> vector<4x128xf32>
    %120 = vector.extract_strided_slice %96 {offsets = [0, 128], sizes = [4, 128], strides = [1, 1]} : vector<4x256xf32> to vector<4x128xf32>
    %121 = arith.addf %119, %120 : vector<4x128xf32>
    %122 = vector.broadcast %40 : vector<1x128xf32> to vector<4x128xf32>
    %123 = arith.addf %121, %122 : vector<4x128xf32>
    %124 = arith.negf %123 : vector<4x128xf32>
    %125 = math.exp %124 : vector<4x128xf32>
    %cst_30 = arith.constant 1.000000e+00 : f32
    %126 = vector.broadcast %cst_30 : f32 to vector<4x128xf32>
    %127 = arith.addf %126, %125 : vector<4x128xf32>
    %128 = arith.divf %126, %127 : vector<4x128xf32>
    %129 = vector.extract_strided_slice %128 {offsets = [0, 0], sizes = [4, 32], strides = [1, 1]} : vector<4x128xf32> to vector<4x32xf32>
    %130 = vector.extract_strided_slice %128 {offsets = [0, 32], sizes = [4, 32], strides = [1, 1]} : vector<4x128xf32> to vector<4x32xf32>
    %131 = vector.extract_strided_slice %128 {offsets = [0, 64], sizes = [4, 32], strides = [1, 1]} : vector<4x128xf32> to vector<4x32xf32>
    %cst_31 = arith.constant 2.000000e+00 : f32
    %132 = vector.broadcast %cst_31 : f32 to vector<4x32xf32>
    %133 = arith.mulf %132, %131 : vector<4x32xf32>
    %cst_32 = arith.constant 1.000000e+00 : f32
    %134 = vector.broadcast %cst_32 : f32 to vector<4x32xf32>
    %135 = arith.subf %133, %134 : vector<4x32xf32>
    %136 = vector.extract_strided_slice %128 {offsets = [0, 96], sizes = [4, 32], strides = [1, 1]} : vector<4x128xf32> to vector<4x32xf32>
    %137 = arith.mulf %130, %91 : vector<4x32xf32>
    %138 = arith.mulf %129, %135 : vector<4x32xf32>
    %139 = arith.addf %137, %138 : vector<4x32xf32>
    %140 = math.tanh %139 : vector<4x32xf32>
    %141 = arith.mulf %136, %140 : vector<4x32xf32>
    %142 = tpu.concatenate %117, %141 in 1 : vector<4x32xf32>, vector<4x32xf32> -> vector<4x64xf32>
    %143 = arith.truncf %142 : vector<4x64xf32> to vector<4x64xbf16>
    %cst_33 = arith.constant dense<0.000000e+00> : vector<4x256xf32>
    %144 = tpu.matmul %143, %42, %cst_33 {dimension_numbers = #tpu.dot_dimension_numbers<[1], [0], [0], [1], [0, 0, 1, 1], [], []>} : vector<4x64xbf16>, vector<64x256xbf16>, vector<4x256xf32> -> vector<4x256xf32>
    %145 = vector.extract_strided_slice %39 {offsets = [8, 0], sizes = [4, 128], strides = [1, 1]} : vector<32x128xf32> to vector<4x128xf32>
    %146 = vector.extract_strided_slice %144 {offsets = [0, 0], sizes = [4, 128], strides = [1, 1]} : vector<4x256xf32> to vector<4x128xf32>
    %147 = arith.addf %145, %146 : vector<4x128xf32>
    %148 = arith.negf %147 : vector<4x128xf32>
    %149 = math.exp %148 : vector<4x128xf32>
    %cst_34 = arith.constant 1.000000e+00 : f32
    %150 = vector.broadcast %cst_34 : f32 to vector<4x128xf32>
    %151 = arith.addf %150, %149 : vector<4x128xf32>
    %152 = arith.divf %150, %151 : vector<4x128xf32>
    %153 = vector.extract_strided_slice %152 {offsets = [0, 0], sizes = [4, 32], strides = [1, 1]} : vector<4x128xf32> to vector<4x32xf32>
    %154 = vector.extract_strided_slice %152 {offsets = [0, 32], sizes = [4, 32], strides = [1, 1]} : vector<4x128xf32> to vector<4x32xf32>
    %155 = vector.extract_strided_slice %152 {offsets = [0, 64], sizes = [4, 32], strides = [1, 1]} : vector<4x128xf32> to vector<4x32xf32>
    %cst_35 = arith.constant 2.000000e+00 : f32
    %156 = vector.broadcast %cst_35 : f32 to vector<4x32xf32>
    %157 = arith.mulf %156, %155 : vector<4x32xf32>
    %cst_36 = arith.constant 1.000000e+00 : f32
    %158 = vector.broadcast %cst_36 : f32 to vector<4x32xf32>
    %159 = arith.subf %157, %158 : vector<4x32xf32>
    %160 = vector.extract_strided_slice %152 {offsets = [0, 96], sizes = [4, 32], strides = [1, 1]} : vector<4x128xf32> to vector<4x32xf32>
    %161 = arith.mulf %154, %115 : vector<4x32xf32>
    %162 = arith.mulf %153, %159 : vector<4x32xf32>
    %163 = arith.addf %161, %162 : vector<4x32xf32>
    %164 = math.tanh %163 : vector<4x32xf32>
    %165 = arith.mulf %160, %164 : vector<4x32xf32>
    %166 = arith.truncf %165 : vector<4x32xf32> to vector<4x32xbf16>
    %cst_37 = arith.constant dense<0.000000e+00> : vector<4x128xf32>
    %167 = tpu.matmul %166, %44, %cst_37 {dimension_numbers = #tpu.dot_dimension_numbers<[1], [0], [0], [1], [0, 0, 1, 1], [], []>} : vector<4x32xbf16>, vector<32x128xbf16>, vector<4x128xf32> -> vector<4x128xf32>
    %168 = vector.extract_strided_slice %144 {offsets = [0, 128], sizes = [4, 128], strides = [1, 1]} : vector<4x256xf32> to vector<4x128xf32>
    %169 = arith.addf %167, %168 : vector<4x128xf32>
    %170 = vector.broadcast %40 : vector<1x128xf32> to vector<4x128xf32>
    %171 = arith.addf %169, %170 : vector<4x128xf32>
    %172 = arith.negf %171 : vector<4x128xf32>
    %173 = math.exp %172 : vector<4x128xf32>
    %cst_38 = arith.constant 1.000000e+00 : f32
    %174 = vector.broadcast %cst_38 : f32 to vector<4x128xf32>
    %175 = arith.addf %174, %173 : vector<4x128xf32>
    %176 = arith.divf %174, %175 : vector<4x128xf32>
    %177 = vector.extract_strided_slice %176 {offsets = [0, 0], sizes = [4, 32], strides = [1, 1]} : vector<4x128xf32> to vector<4x32xf32>
    %178 = vector.extract_strided_slice %176 {offsets = [0, 32], sizes = [4, 32], strides = [1, 1]} : vector<4x128xf32> to vector<4x32xf32>
    %179 = vector.extract_strided_slice %176 {offsets = [0, 64], sizes = [4, 32], strides = [1, 1]} : vector<4x128xf32> to vector<4x32xf32>
    %cst_39 = arith.constant 2.000000e+00 : f32
    %180 = vector.broadcast %cst_39 : f32 to vector<4x32xf32>
    %181 = arith.mulf %180, %179 : vector<4x32xf32>
    %cst_40 = arith.constant 1.000000e+00 : f32
    %182 = vector.broadcast %cst_40 : f32 to vector<4x32xf32>
    %183 = arith.subf %181, %182 : vector<4x32xf32>
    %184 = vector.extract_strided_slice %176 {offsets = [0, 96], sizes = [4, 32], strides = [1, 1]} : vector<4x128xf32> to vector<4x32xf32>
    %185 = arith.mulf %178, %139 : vector<4x32xf32>
    %186 = arith.mulf %177, %183 : vector<4x32xf32>
    %187 = arith.addf %185, %186 : vector<4x32xf32>
    %188 = math.tanh %187 : vector<4x32xf32>
    %189 = arith.mulf %184, %188 : vector<4x32xf32>
    %190 = tpu.concatenate %165, %189 in 1 : vector<4x32xf32>, vector<4x32xf32> -> vector<4x64xf32>
    %191 = arith.truncf %190 : vector<4x64xf32> to vector<4x64xbf16>
    %cst_41 = arith.constant dense<0.000000e+00> : vector<4x256xf32>
    %192 = tpu.matmul %191, %42, %cst_41 {dimension_numbers = #tpu.dot_dimension_numbers<[1], [0], [0], [1], [0, 0, 1, 1], [], []>} : vector<4x64xbf16>, vector<64x256xbf16>, vector<4x256xf32> -> vector<4x256xf32>
    %193 = vector.extract_strided_slice %39 {offsets = [12, 0], sizes = [4, 128], strides = [1, 1]} : vector<32x128xf32> to vector<4x128xf32>
    %194 = vector.extract_strided_slice %192 {offsets = [0, 0], sizes = [4, 128], strides = [1, 1]} : vector<4x256xf32> to vector<4x128xf32>
    %195 = arith.addf %193, %194 : vector<4x128xf32>
    %196 = arith.negf %195 : vector<4x128xf32>
    %197 = math.exp %196 : vector<4x128xf32>
    %cst_42 = arith.constant 1.000000e+00 : f32
    %198 = vector.broadcast %cst_42 : f32 to vector<4x128xf32>
    %199 = arith.addf %198, %197 : vector<4x128xf32>
    %200 = arith.divf %198, %199 : vector<4x128xf32>
    %201 = vector.extract_strided_slice %200 {offsets = [0, 0], sizes = [4, 32], strides = [1, 1]} : vector<4x128xf32> to vector<4x32xf32>
    %202 = vector.extract_strided_slice %200 {offsets = [0, 32], sizes = [4, 32], strides = [1, 1]} : vector<4x128xf32> to vector<4x32xf32>
    %203 = vector.extract_strided_slice %200 {offsets = [0, 64], sizes = [4, 32], strides = [1, 1]} : vector<4x128xf32> to vector<4x32xf32>
    %cst_43 = arith.constant 2.000000e+00 : f32
    %204 = vector.broadcast %cst_43 : f32 to vector<4x32xf32>
    %205 = arith.mulf %204, %203 : vector<4x32xf32>
    %cst_44 = arith.constant 1.000000e+00 : f32
    %206 = vector.broadcast %cst_44 : f32 to vector<4x32xf32>
    %207 = arith.subf %205, %206 : vector<4x32xf32>
    %208 = vector.extract_strided_slice %200 {offsets = [0, 96], sizes = [4, 32], strides = [1, 1]} : vector<4x128xf32> to vector<4x32xf32>
    %209 = arith.mulf %202, %163 : vector<4x32xf32>
    %210 = arith.mulf %201, %207 : vector<4x32xf32>
    %211 = arith.addf %209, %210 : vector<4x32xf32>
    %212 = math.tanh %211 : vector<4x32xf32>
    %213 = arith.mulf %208, %212 : vector<4x32xf32>
    %214 = arith.truncf %213 : vector<4x32xf32> to vector<4x32xbf16>
    %cst_45 = arith.constant dense<0.000000e+00> : vector<4x128xf32>
    %215 = tpu.matmul %214, %44, %cst_45 {dimension_numbers = #tpu.dot_dimension_numbers<[1], [0], [0], [1], [0, 0, 1, 1], [], []>} : vector<4x32xbf16>, vector<32x128xbf16>, vector<4x128xf32> -> vector<4x128xf32>
    %216 = vector.extract_strided_slice %192 {offsets = [0, 128], sizes = [4, 128], strides = [1, 1]} : vector<4x256xf32> to vector<4x128xf32>
    %217 = arith.addf %215, %216 : vector<4x128xf32>
    %218 = vector.broadcast %40 : vector<1x128xf32> to vector<4x128xf32>
    %219 = arith.addf %217, %218 : vector<4x128xf32>
    %220 = arith.negf %219 : vector<4x128xf32>
    %221 = math.exp %220 : vector<4x128xf32>
    %cst_46 = arith.constant 1.000000e+00 : f32
    %222 = vector.broadcast %cst_46 : f32 to vector<4x128xf32>
    %223 = arith.addf %222, %221 : vector<4x128xf32>
    %224 = arith.divf %222, %223 : vector<4x128xf32>
    %225 = vector.extract_strided_slice %224 {offsets = [0, 0], sizes = [4, 32], strides = [1, 1]} : vector<4x128xf32> to vector<4x32xf32>
    %226 = vector.extract_strided_slice %224 {offsets = [0, 32], sizes = [4, 32], strides = [1, 1]} : vector<4x128xf32> to vector<4x32xf32>
    %227 = vector.extract_strided_slice %224 {offsets = [0, 64], sizes = [4, 32], strides = [1, 1]} : vector<4x128xf32> to vector<4x32xf32>
    %cst_47 = arith.constant 2.000000e+00 : f32
    %228 = vector.broadcast %cst_47 : f32 to vector<4x32xf32>
    %229 = arith.mulf %228, %227 : vector<4x32xf32>
    %cst_48 = arith.constant 1.000000e+00 : f32
    %230 = vector.broadcast %cst_48 : f32 to vector<4x32xf32>
    %231 = arith.subf %229, %230 : vector<4x32xf32>
    %232 = vector.extract_strided_slice %224 {offsets = [0, 96], sizes = [4, 32], strides = [1, 1]} : vector<4x128xf32> to vector<4x32xf32>
    %233 = arith.mulf %226, %187 : vector<4x32xf32>
    %234 = arith.mulf %225, %231 : vector<4x32xf32>
    %235 = arith.addf %233, %234 : vector<4x32xf32>
    %236 = math.tanh %235 : vector<4x32xf32>
    %237 = arith.mulf %232, %236 : vector<4x32xf32>
    %238 = tpu.concatenate %213, %237 in 1 : vector<4x32xf32>, vector<4x32xf32> -> vector<4x64xf32>
    %239 = arith.truncf %238 : vector<4x64xf32> to vector<4x64xbf16>
    %cst_49 = arith.constant dense<0.000000e+00> : vector<4x256xf32>
    %240 = tpu.matmul %239, %42, %cst_49 {dimension_numbers = #tpu.dot_dimension_numbers<[1], [0], [0], [1], [0, 0, 1, 1], [], []>} : vector<4x64xbf16>, vector<64x256xbf16>, vector<4x256xf32> -> vector<4x256xf32>
    %241 = vector.extract_strided_slice %39 {offsets = [16, 0], sizes = [4, 128], strides = [1, 1]} : vector<32x128xf32> to vector<4x128xf32>
    %242 = vector.extract_strided_slice %240 {offsets = [0, 0], sizes = [4, 128], strides = [1, 1]} : vector<4x256xf32> to vector<4x128xf32>
    %243 = arith.addf %241, %242 : vector<4x128xf32>
    %244 = arith.negf %243 : vector<4x128xf32>
    %245 = math.exp %244 : vector<4x128xf32>
    %cst_50 = arith.constant 1.000000e+00 : f32
    %246 = vector.broadcast %cst_50 : f32 to vector<4x128xf32>
    %247 = arith.addf %246, %245 : vector<4x128xf32>
    %248 = arith.divf %246, %247 : vector<4x128xf32>
    %249 = vector.extract_strided_slice %248 {offsets = [0, 0], sizes = [4, 32], strides = [1, 1]} : vector<4x128xf32> to vector<4x32xf32>
    %250 = vector.extract_strided_slice %248 {offsets = [0, 32], sizes = [4, 32], strides = [1, 1]} : vector<4x128xf32> to vector<4x32xf32>
    %251 = vector.extract_strided_slice %248 {offsets = [0, 64], sizes = [4, 32], strides = [1, 1]} : vector<4x128xf32> to vector<4x32xf32>
    %cst_51 = arith.constant 2.000000e+00 : f32
    %252 = vector.broadcast %cst_51 : f32 to vector<4x32xf32>
    %253 = arith.mulf %252, %251 : vector<4x32xf32>
    %cst_52 = arith.constant 1.000000e+00 : f32
    %254 = vector.broadcast %cst_52 : f32 to vector<4x32xf32>
    %255 = arith.subf %253, %254 : vector<4x32xf32>
    %256 = vector.extract_strided_slice %248 {offsets = [0, 96], sizes = [4, 32], strides = [1, 1]} : vector<4x128xf32> to vector<4x32xf32>
    %257 = arith.mulf %250, %211 : vector<4x32xf32>
    %258 = arith.mulf %249, %255 : vector<4x32xf32>
    %259 = arith.addf %257, %258 : vector<4x32xf32>
    %260 = math.tanh %259 : vector<4x32xf32>
    %261 = arith.mulf %256, %260 : vector<4x32xf32>
    %262 = arith.truncf %261 : vector<4x32xf32> to vector<4x32xbf16>
    %cst_53 = arith.constant dense<0.000000e+00> : vector<4x128xf32>
    %263 = tpu.matmul %262, %44, %cst_53 {dimension_numbers = #tpu.dot_dimension_numbers<[1], [0], [0], [1], [0, 0, 1, 1], [], []>} : vector<4x32xbf16>, vector<32x128xbf16>, vector<4x128xf32> -> vector<4x128xf32>
    %264 = vector.extract_strided_slice %240 {offsets = [0, 128], sizes = [4, 128], strides = [1, 1]} : vector<4x256xf32> to vector<4x128xf32>
    %265 = arith.addf %263, %264 : vector<4x128xf32>
    %266 = vector.broadcast %40 : vector<1x128xf32> to vector<4x128xf32>
    %267 = arith.addf %265, %266 : vector<4x128xf32>
    %268 = arith.negf %267 : vector<4x128xf32>
    %269 = math.exp %268 : vector<4x128xf32>
    %cst_54 = arith.constant 1.000000e+00 : f32
    %270 = vector.broadcast %cst_54 : f32 to vector<4x128xf32>
    %271 = arith.addf %270, %269 : vector<4x128xf32>
    %272 = arith.divf %270, %271 : vector<4x128xf32>
    %273 = vector.extract_strided_slice %272 {offsets = [0, 0], sizes = [4, 32], strides = [1, 1]} : vector<4x128xf32> to vector<4x32xf32>
    %274 = vector.extract_strided_slice %272 {offsets = [0, 32], sizes = [4, 32], strides = [1, 1]} : vector<4x128xf32> to vector<4x32xf32>
    %275 = vector.extract_strided_slice %272 {offsets = [0, 64], sizes = [4, 32], strides = [1, 1]} : vector<4x128xf32> to vector<4x32xf32>
    %cst_55 = arith.constant 2.000000e+00 : f32
    %276 = vector.broadcast %cst_55 : f32 to vector<4x32xf32>
    %277 = arith.mulf %276, %275 : vector<4x32xf32>
    %cst_56 = arith.constant 1.000000e+00 : f32
    %278 = vector.broadcast %cst_56 : f32 to vector<4x32xf32>
    %279 = arith.subf %277, %278 : vector<4x32xf32>
    %280 = vector.extract_strided_slice %272 {offsets = [0, 96], sizes = [4, 32], strides = [1, 1]} : vector<4x128xf32> to vector<4x32xf32>
    %281 = arith.mulf %274, %235 : vector<4x32xf32>
    %282 = arith.mulf %273, %279 : vector<4x32xf32>
    %283 = arith.addf %281, %282 : vector<4x32xf32>
    %284 = math.tanh %283 : vector<4x32xf32>
    %285 = arith.mulf %280, %284 : vector<4x32xf32>
    %286 = tpu.concatenate %261, %285 in 1 : vector<4x32xf32>, vector<4x32xf32> -> vector<4x64xf32>
    %287 = arith.truncf %286 : vector<4x64xf32> to vector<4x64xbf16>
    %cst_57 = arith.constant dense<0.000000e+00> : vector<4x256xf32>
    %288 = tpu.matmul %287, %42, %cst_57 {dimension_numbers = #tpu.dot_dimension_numbers<[1], [0], [0], [1], [0, 0, 1, 1], [], []>} : vector<4x64xbf16>, vector<64x256xbf16>, vector<4x256xf32> -> vector<4x256xf32>
    %289 = vector.extract_strided_slice %39 {offsets = [20, 0], sizes = [4, 128], strides = [1, 1]} : vector<32x128xf32> to vector<4x128xf32>
    %290 = vector.extract_strided_slice %288 {offsets = [0, 0], sizes = [4, 128], strides = [1, 1]} : vector<4x256xf32> to vector<4x128xf32>
    %291 = arith.addf %289, %290 : vector<4x128xf32>
    %292 = arith.negf %291 : vector<4x128xf32>
    %293 = math.exp %292 : vector<4x128xf32>
    %cst_58 = arith.constant 1.000000e+00 : f32
    %294 = vector.broadcast %cst_58 : f32 to vector<4x128xf32>
    %295 = arith.addf %294, %293 : vector<4x128xf32>
    %296 = arith.divf %294, %295 : vector<4x128xf32>
    %297 = vector.extract_strided_slice %296 {offsets = [0, 0], sizes = [4, 32], strides = [1, 1]} : vector<4x128xf32> to vector<4x32xf32>
    %298 = vector.extract_strided_slice %296 {offsets = [0, 32], sizes = [4, 32], strides = [1, 1]} : vector<4x128xf32> to vector<4x32xf32>
    %299 = vector.extract_strided_slice %296 {offsets = [0, 64], sizes = [4, 32], strides = [1, 1]} : vector<4x128xf32> to vector<4x32xf32>
    %cst_59 = arith.constant 2.000000e+00 : f32
    %300 = vector.broadcast %cst_59 : f32 to vector<4x32xf32>
    %301 = arith.mulf %300, %299 : vector<4x32xf32>
    %cst_60 = arith.constant 1.000000e+00 : f32
    %302 = vector.broadcast %cst_60 : f32 to vector<4x32xf32>
    %303 = arith.subf %301, %302 : vector<4x32xf32>
    %304 = vector.extract_strided_slice %296 {offsets = [0, 96], sizes = [4, 32], strides = [1, 1]} : vector<4x128xf32> to vector<4x32xf32>
    %305 = arith.mulf %298, %259 : vector<4x32xf32>
    %306 = arith.mulf %297, %303 : vector<4x32xf32>
    %307 = arith.addf %305, %306 : vector<4x32xf32>
    %308 = math.tanh %307 : vector<4x32xf32>
    %309 = arith.mulf %304, %308 : vector<4x32xf32>
    %310 = arith.truncf %309 : vector<4x32xf32> to vector<4x32xbf16>
    %cst_61 = arith.constant dense<0.000000e+00> : vector<4x128xf32>
    %311 = tpu.matmul %310, %44, %cst_61 {dimension_numbers = #tpu.dot_dimension_numbers<[1], [0], [0], [1], [0, 0, 1, 1], [], []>} : vector<4x32xbf16>, vector<32x128xbf16>, vector<4x128xf32> -> vector<4x128xf32>
    %312 = vector.extract_strided_slice %288 {offsets = [0, 128], sizes = [4, 128], strides = [1, 1]} : vector<4x256xf32> to vector<4x128xf32>
    %313 = arith.addf %311, %312 : vector<4x128xf32>
    %314 = vector.broadcast %40 : vector<1x128xf32> to vector<4x128xf32>
    %315 = arith.addf %313, %314 : vector<4x128xf32>
    %316 = arith.negf %315 : vector<4x128xf32>
    %317 = math.exp %316 : vector<4x128xf32>
    %cst_62 = arith.constant 1.000000e+00 : f32
    %318 = vector.broadcast %cst_62 : f32 to vector<4x128xf32>
    %319 = arith.addf %318, %317 : vector<4x128xf32>
    %320 = arith.divf %318, %319 : vector<4x128xf32>
    %321 = vector.extract_strided_slice %320 {offsets = [0, 0], sizes = [4, 32], strides = [1, 1]} : vector<4x128xf32> to vector<4x32xf32>
    %322 = vector.extract_strided_slice %320 {offsets = [0, 32], sizes = [4, 32], strides = [1, 1]} : vector<4x128xf32> to vector<4x32xf32>
    %323 = vector.extract_strided_slice %320 {offsets = [0, 64], sizes = [4, 32], strides = [1, 1]} : vector<4x128xf32> to vector<4x32xf32>
    %cst_63 = arith.constant 2.000000e+00 : f32
    %324 = vector.broadcast %cst_63 : f32 to vector<4x32xf32>
    %325 = arith.mulf %324, %323 : vector<4x32xf32>
    %cst_64 = arith.constant 1.000000e+00 : f32
    %326 = vector.broadcast %cst_64 : f32 to vector<4x32xf32>
    %327 = arith.subf %325, %326 : vector<4x32xf32>
    %328 = vector.extract_strided_slice %320 {offsets = [0, 96], sizes = [4, 32], strides = [1, 1]} : vector<4x128xf32> to vector<4x32xf32>
    %329 = arith.mulf %322, %283 : vector<4x32xf32>
    %330 = arith.mulf %321, %327 : vector<4x32xf32>
    %331 = arith.addf %329, %330 : vector<4x32xf32>
    %332 = math.tanh %331 : vector<4x32xf32>
    %333 = arith.mulf %328, %332 : vector<4x32xf32>
    %334 = tpu.concatenate %309, %333 in 1 : vector<4x32xf32>, vector<4x32xf32> -> vector<4x64xf32>
    %335 = arith.truncf %334 : vector<4x64xf32> to vector<4x64xbf16>
    %cst_65 = arith.constant dense<0.000000e+00> : vector<4x256xf32>
    %336 = tpu.matmul %335, %42, %cst_65 {dimension_numbers = #tpu.dot_dimension_numbers<[1], [0], [0], [1], [0, 0, 1, 1], [], []>} : vector<4x64xbf16>, vector<64x256xbf16>, vector<4x256xf32> -> vector<4x256xf32>
    %337 = vector.extract_strided_slice %39 {offsets = [24, 0], sizes = [4, 128], strides = [1, 1]} : vector<32x128xf32> to vector<4x128xf32>
    %338 = vector.extract_strided_slice %336 {offsets = [0, 0], sizes = [4, 128], strides = [1, 1]} : vector<4x256xf32> to vector<4x128xf32>
    %339 = arith.addf %337, %338 : vector<4x128xf32>
    %340 = arith.negf %339 : vector<4x128xf32>
    %341 = math.exp %340 : vector<4x128xf32>
    %cst_66 = arith.constant 1.000000e+00 : f32
    %342 = vector.broadcast %cst_66 : f32 to vector<4x128xf32>
    %343 = arith.addf %342, %341 : vector<4x128xf32>
    %344 = arith.divf %342, %343 : vector<4x128xf32>
    %345 = vector.extract_strided_slice %344 {offsets = [0, 0], sizes = [4, 32], strides = [1, 1]} : vector<4x128xf32> to vector<4x32xf32>
    %346 = vector.extract_strided_slice %344 {offsets = [0, 32], sizes = [4, 32], strides = [1, 1]} : vector<4x128xf32> to vector<4x32xf32>
    %347 = vector.extract_strided_slice %344 {offsets = [0, 64], sizes = [4, 32], strides = [1, 1]} : vector<4x128xf32> to vector<4x32xf32>
    %cst_67 = arith.constant 2.000000e+00 : f32
    %348 = vector.broadcast %cst_67 : f32 to vector<4x32xf32>
    %349 = arith.mulf %348, %347 : vector<4x32xf32>
    %cst_68 = arith.constant 1.000000e+00 : f32
    %350 = vector.broadcast %cst_68 : f32 to vector<4x32xf32>
    %351 = arith.subf %349, %350 : vector<4x32xf32>
    %352 = vector.extract_strided_slice %344 {offsets = [0, 96], sizes = [4, 32], strides = [1, 1]} : vector<4x128xf32> to vector<4x32xf32>
    %353 = arith.mulf %346, %307 : vector<4x32xf32>
    %354 = arith.mulf %345, %351 : vector<4x32xf32>
    %355 = arith.addf %353, %354 : vector<4x32xf32>
    %356 = math.tanh %355 : vector<4x32xf32>
    %357 = arith.mulf %352, %356 : vector<4x32xf32>
    %358 = arith.truncf %357 : vector<4x32xf32> to vector<4x32xbf16>
    %cst_69 = arith.constant dense<0.000000e+00> : vector<4x128xf32>
    %359 = tpu.matmul %358, %44, %cst_69 {dimension_numbers = #tpu.dot_dimension_numbers<[1], [0], [0], [1], [0, 0, 1, 1], [], []>} : vector<4x32xbf16>, vector<32x128xbf16>, vector<4x128xf32> -> vector<4x128xf32>
    %360 = vector.extract_strided_slice %336 {offsets = [0, 128], sizes = [4, 128], strides = [1, 1]} : vector<4x256xf32> to vector<4x128xf32>
    %361 = arith.addf %359, %360 : vector<4x128xf32>
    %362 = vector.broadcast %40 : vector<1x128xf32> to vector<4x128xf32>
    %363 = arith.addf %361, %362 : vector<4x128xf32>
    %364 = arith.negf %363 : vector<4x128xf32>
    %365 = math.exp %364 : vector<4x128xf32>
    %cst_70 = arith.constant 1.000000e+00 : f32
    %366 = vector.broadcast %cst_70 : f32 to vector<4x128xf32>
    %367 = arith.addf %366, %365 : vector<4x128xf32>
    %368 = arith.divf %366, %367 : vector<4x128xf32>
    %369 = vector.extract_strided_slice %368 {offsets = [0, 0], sizes = [4, 32], strides = [1, 1]} : vector<4x128xf32> to vector<4x32xf32>
    %370 = vector.extract_strided_slice %368 {offsets = [0, 32], sizes = [4, 32], strides = [1, 1]} : vector<4x128xf32> to vector<4x32xf32>
    %371 = vector.extract_strided_slice %368 {offsets = [0, 64], sizes = [4, 32], strides = [1, 1]} : vector<4x128xf32> to vector<4x32xf32>
    %cst_71 = arith.constant 2.000000e+00 : f32
    %372 = vector.broadcast %cst_71 : f32 to vector<4x32xf32>
    %373 = arith.mulf %372, %371 : vector<4x32xf32>
    %cst_72 = arith.constant 1.000000e+00 : f32
    %374 = vector.broadcast %cst_72 : f32 to vector<4x32xf32>
    %375 = arith.subf %373, %374 : vector<4x32xf32>
    %376 = vector.extract_strided_slice %368 {offsets = [0, 96], sizes = [4, 32], strides = [1, 1]} : vector<4x128xf32> to vector<4x32xf32>
    %377 = arith.mulf %370, %331 : vector<4x32xf32>
    %378 = arith.mulf %369, %375 : vector<4x32xf32>
    %379 = arith.addf %377, %378 : vector<4x32xf32>
    %380 = math.tanh %379 : vector<4x32xf32>
    %381 = arith.mulf %376, %380 : vector<4x32xf32>
    %382 = tpu.concatenate %357, %381 in 1 : vector<4x32xf32>, vector<4x32xf32> -> vector<4x64xf32>
    %383 = arith.truncf %382 : vector<4x64xf32> to vector<4x64xbf16>
    %cst_73 = arith.constant dense<0.000000e+00> : vector<4x256xf32>
    %384 = tpu.matmul %383, %42, %cst_73 {dimension_numbers = #tpu.dot_dimension_numbers<[1], [0], [0], [1], [0, 0, 1, 1], [], []>} : vector<4x64xbf16>, vector<64x256xbf16>, vector<4x256xf32> -> vector<4x256xf32>
    %385 = vector.extract_strided_slice %39 {offsets = [28, 0], sizes = [4, 128], strides = [1, 1]} : vector<32x128xf32> to vector<4x128xf32>
    %386 = vector.extract_strided_slice %384 {offsets = [0, 0], sizes = [4, 128], strides = [1, 1]} : vector<4x256xf32> to vector<4x128xf32>
    %387 = arith.addf %385, %386 : vector<4x128xf32>
    %388 = arith.negf %387 : vector<4x128xf32>
    %389 = math.exp %388 : vector<4x128xf32>
    %cst_74 = arith.constant 1.000000e+00 : f32
    %390 = vector.broadcast %cst_74 : f32 to vector<4x128xf32>
    %391 = arith.addf %390, %389 : vector<4x128xf32>
    %392 = arith.divf %390, %391 : vector<4x128xf32>
    %393 = vector.extract_strided_slice %392 {offsets = [0, 0], sizes = [4, 32], strides = [1, 1]} : vector<4x128xf32> to vector<4x32xf32>
    %394 = vector.extract_strided_slice %392 {offsets = [0, 32], sizes = [4, 32], strides = [1, 1]} : vector<4x128xf32> to vector<4x32xf32>
    %395 = vector.extract_strided_slice %392 {offsets = [0, 64], sizes = [4, 32], strides = [1, 1]} : vector<4x128xf32> to vector<4x32xf32>
    %cst_75 = arith.constant 2.000000e+00 : f32
    %396 = vector.broadcast %cst_75 : f32 to vector<4x32xf32>
    %397 = arith.mulf %396, %395 : vector<4x32xf32>
    %cst_76 = arith.constant 1.000000e+00 : f32
    %398 = vector.broadcast %cst_76 : f32 to vector<4x32xf32>
    %399 = arith.subf %397, %398 : vector<4x32xf32>
    %400 = vector.extract_strided_slice %392 {offsets = [0, 96], sizes = [4, 32], strides = [1, 1]} : vector<4x128xf32> to vector<4x32xf32>
    %401 = arith.mulf %394, %355 : vector<4x32xf32>
    %402 = arith.mulf %393, %399 : vector<4x32xf32>
    %403 = arith.addf %401, %402 : vector<4x32xf32>
    %404 = math.tanh %403 : vector<4x32xf32>
    %405 = arith.mulf %400, %404 : vector<4x32xf32>
    %406 = arith.truncf %405 : vector<4x32xf32> to vector<4x32xbf16>
    %cst_77 = arith.constant dense<0.000000e+00> : vector<4x128xf32>
    %407 = tpu.matmul %406, %44, %cst_77 {dimension_numbers = #tpu.dot_dimension_numbers<[1], [0], [0], [1], [0, 0, 1, 1], [], []>} : vector<4x32xbf16>, vector<32x128xbf16>, vector<4x128xf32> -> vector<4x128xf32>
    %408 = vector.extract_strided_slice %384 {offsets = [0, 128], sizes = [4, 128], strides = [1, 1]} : vector<4x256xf32> to vector<4x128xf32>
    %409 = arith.addf %407, %408 : vector<4x128xf32>
    %410 = vector.broadcast %40 : vector<1x128xf32> to vector<4x128xf32>
    %411 = arith.addf %409, %410 : vector<4x128xf32>
    %412 = arith.negf %411 : vector<4x128xf32>
    %413 = math.exp %412 : vector<4x128xf32>
    %cst_78 = arith.constant 1.000000e+00 : f32
    %414 = vector.broadcast %cst_78 : f32 to vector<4x128xf32>
    %415 = arith.addf %414, %413 : vector<4x128xf32>
    %416 = arith.divf %414, %415 : vector<4x128xf32>
    %417 = vector.extract_strided_slice %416 {offsets = [0, 0], sizes = [4, 32], strides = [1, 1]} : vector<4x128xf32> to vector<4x32xf32>
    %418 = vector.extract_strided_slice %416 {offsets = [0, 32], sizes = [4, 32], strides = [1, 1]} : vector<4x128xf32> to vector<4x32xf32>
    %419 = vector.extract_strided_slice %416 {offsets = [0, 64], sizes = [4, 32], strides = [1, 1]} : vector<4x128xf32> to vector<4x32xf32>
    %cst_79 = arith.constant 2.000000e+00 : f32
    %420 = vector.broadcast %cst_79 : f32 to vector<4x32xf32>
    %421 = arith.mulf %420, %419 : vector<4x32xf32>
    %cst_80 = arith.constant 1.000000e+00 : f32
    %422 = vector.broadcast %cst_80 : f32 to vector<4x32xf32>
    %423 = arith.subf %421, %422 : vector<4x32xf32>
    %424 = vector.extract_strided_slice %416 {offsets = [0, 96], sizes = [4, 32], strides = [1, 1]} : vector<4x128xf32> to vector<4x32xf32>
    %425 = arith.mulf %418, %379 : vector<4x32xf32>
    %426 = arith.mulf %417, %423 : vector<4x32xf32>
    %427 = arith.addf %425, %426 : vector<4x32xf32>
    %428 = math.tanh %427 : vector<4x32xf32>
    %429 = arith.mulf %424, %428 : vector<4x32xf32>
    %c0_81 = arith.constant 0 : index
    %c0_82 = arith.constant 0 : index
    %430 = vector.load %arg7[%c0_81, %c0_82] : memref<9x64xf32, #tpu.memory_space<vmem>>, vector<9x64xf32>
    %c0_83 = arith.constant 0 : index
    %c0_84 = arith.constant 0 : index
    %431 = vector.load %arg1[%c0_83, %c0_84] : memref<4x8xf32, #tpu.memory_space<vmem>>, vector<4x8xf32>
    %432 = vector.extract_strided_slice %430 {offsets = [0, 0], sizes = [8, 64], strides = [1, 1]} : vector<9x64xf32> to vector<8x64xf32>
    %cst_85 = arith.constant dense<0.000000e+00> : vector<4x64xf32>
    %433 = tpu.matmul %431, %432, %cst_85 {dimension_numbers = #tpu.dot_dimension_numbers<[1], [0], [0], [1], [0, 0, 1, 1], [], []>} : vector<4x8xf32>, vector<8x64xf32>, vector<4x64xf32> -> vector<4x64xf32>
    %434 = vector.extract_strided_slice %433 {offsets = [0, 0], sizes = [4, 32], strides = [1, 1]} : vector<4x64xf32> to vector<4x32xf32>
    %435 = vector.extract_strided_slice %433 {offsets = [0, 32], sizes = [4, 32], strides = [1, 1]} : vector<4x64xf32> to vector<4x32xf32>
    %436 = vector.extract_strided_slice %430 {offsets = [8, 0], sizes = [1, 32], strides = [1, 1]} : vector<9x64xf32> to vector<1x32xf32>
    %c0_86 = arith.constant 0 : index
    %c0_87 = arith.constant 0 : index
    %437 = vector.load %arg6[%c0_86, %c0_87] : memref<32x32xf32, #tpu.memory_space<vmem>>, vector<32x32xf32>
    %cst_88 = arith.constant dense<0.000000e+00> : vector<4x32xf32>
    %438 = tpu.matmul %429, %437, %cst_88 {dimension_numbers = #tpu.dot_dimension_numbers<[1], [0], [0], [1], [0, 0, 1, 1], [], []>} : vector<4x32xf32>, vector<32x32xf32>, vector<4x32xf32> -> vector<4x32xf32>
    %439 = vector.broadcast %436 : vector<1x32xf32> to vector<4x32xf32>
    %440 = arith.addf %438, %439 : vector<4x32xf32>
    %cst_89 = arith.constant 0.000000e+00 : f32
    %441 = vector.broadcast %cst_89 : f32 to vector<4x32xf32>
    %442 = arith.maximumf %440, %441 : vector<4x32xf32>
    %cst_90 = arith.constant 1.000000e+00 : f32
    %443 = vector.broadcast %cst_90 : f32 to vector<4x32xf32>
    %444 = arith.addf %443, %434 : vector<4x32xf32>
    %445 = arith.mulf %442, %444 : vector<4x32xf32>
    %446 = arith.addf %445, %435 : vector<4x32xf32>
    %c0_91 = arith.constant 0 : index
    %c0_92 = arith.constant 0 : index
    %447 = vector.load %arg8[%c0_91, %c0_92] : memref<96x128xf32, #tpu.memory_space<vmem>>, vector<96x128xf32>
    %c0_93 = arith.constant 0 : index
    %c0_94 = arith.constant 0 : index
    %448 = vector.load %arg9[%c0_93, %c0_94] : memref<4x128xf32, #tpu.memory_space<vmem>>, vector<4x128xf32>
    %449 = vector.extract_strided_slice %447 {offsets = [0, 0], sizes = [32, 64], strides = [1, 1]} : vector<96x128xf32> to vector<32x64xf32>
    %cst_95 = arith.constant dense<0.000000e+00> : vector<4x64xf32>
    %450 = tpu.matmul %446, %449, %cst_95 {dimension_numbers = #tpu.dot_dimension_numbers<[1], [0], [0], [1], [0, 0, 1, 1], [], []>} : vector<4x32xf32>, vector<32x64xf32>, vector<4x64xf32> -> vector<4x64xf32>
    %451 = vector.extract_strided_slice %448 {offsets = [0, 0], sizes = [1, 64], strides = [1, 1]} : vector<4x128xf32> to vector<1x64xf32>
    %452 = vector.broadcast %451 : vector<1x64xf32> to vector<4x64xf32>
    %453 = arith.addf %450, %452 : vector<4x64xf32>
    %454 = vector.extract_strided_slice %448 {offsets = [1, 0], sizes = [1, 64], strides = [1, 1]} : vector<4x128xf32> to vector<1x64xf32>
    %455 = vector.extract_strided_slice %448 {offsets = [2, 0], sizes = [1, 64], strides = [1, 1]} : vector<4x128xf32> to vector<1x64xf32>
    %cst_96 = arith.constant dense<0.000000e+00> : vector<64xf32>
    %456 = vector.multi_reduction <add>, %453, %cst_96 [0] : vector<4x64xf32> to vector<64xf32>
    %457 = vector.shape_cast %456 : vector<64xf32> to vector<1x64xf32>
    %cst_97 = arith.constant 4.000000e+00 : f32
    %458 = vector.broadcast %cst_97 : f32 to vector<1x64xf32>
    %459 = arith.divf %457, %458 : vector<1x64xf32>
    %460 = arith.mulf %453, %453 : vector<4x64xf32>
    %cst_98 = arith.constant dense<0.000000e+00> : vector<64xf32>
    %461 = vector.multi_reduction <add>, %460, %cst_98 [0] : vector<4x64xf32> to vector<64xf32>
    %462 = vector.shape_cast %461 : vector<64xf32> to vector<1x64xf32>
    %cst_99 = arith.constant 4.000000e+00 : f32
    %463 = vector.broadcast %cst_99 : f32 to vector<1x64xf32>
    %464 = arith.divf %462, %463 : vector<1x64xf32>
    %465 = arith.mulf %459, %459 : vector<1x64xf32>
    %466 = arith.subf %464, %465 : vector<1x64xf32>
    %467 = vector.broadcast %459 : vector<1x64xf32> to vector<4x64xf32>
    %468 = arith.subf %453, %467 : vector<4x64xf32>
    %cst_100 = arith.constant 9.99999974E-6 : f32
    %469 = vector.broadcast %cst_100 : f32 to vector<1x64xf32>
    %470 = arith.addf %466, %469 : vector<1x64xf32>
    %471 = math.rsqrt %470 : vector<1x64xf32>
    %472 = vector.broadcast %471 : vector<1x64xf32> to vector<4x64xf32>
    %473 = arith.mulf %468, %472 : vector<4x64xf32>
    %474 = vector.broadcast %454 : vector<1x64xf32> to vector<4x64xf32>
    %475 = arith.mulf %473, %474 : vector<4x64xf32>
    %476 = vector.broadcast %455 : vector<1x64xf32> to vector<4x64xf32>
    %477 = arith.addf %475, %476 : vector<4x64xf32>
    %cst_101 = arith.constant 0.000000e+00 : f32
    %478 = vector.broadcast %cst_101 : f32 to vector<4x64xf32>
    %479 = arith.maximumf %477, %478 : vector<4x64xf32>
    %480 = vector.extract_strided_slice %447 {offsets = [32, 0], sizes = [64, 128], strides = [1, 1]} : vector<96x128xf32> to vector<64x128xf32>
    %cst_102 = arith.constant dense<0.000000e+00> : vector<4x128xf32>
    %481 = tpu.matmul %479, %480, %cst_102 {dimension_numbers = #tpu.dot_dimension_numbers<[1], [0], [0], [1], [0, 0, 1, 1], [], []>} : vector<4x64xf32>, vector<64x128xf32>, vector<4x128xf32> -> vector<4x128xf32>
    %482 = vector.extract_strided_slice %448 {offsets = [3, 0], sizes = [1, 128], strides = [1, 1]} : vector<4x128xf32> to vector<1x128xf32>
    %483 = vector.broadcast %482 : vector<1x128xf32> to vector<4x128xf32>
    %484 = arith.addf %481, %483 : vector<4x128xf32>
    %485 = tpu.iota {dimensions = array<i32: 1>} : vector<4x128xi32>
    %c8_i32 = arith.constant 8 : i32
    %486 = vector.broadcast %c8_i32 : i32 to vector<4x128xi32>
    %487 = arith.cmpi slt, %485, %486 : vector<4x128xi32>
    %cst_103 = arith.constant 0.000000e+00 : f32
    %488 = vector.broadcast %cst_103 : f32 to vector<4x128xf32>
    %489 = arith.select %487, %484, %488 : vector<4x128xi1>, vector<4x128xf32>
    %490 = arith.mulf %489, %489 : vector<4x128xf32>
    %cst_104 = arith.constant dense<0.000000e+00> : vector<4xf32>
    %491 = vector.multi_reduction <add>, %490, %cst_104 [1] : vector<4x128xf32> to vector<4xf32>
    %492 = vector.shape_cast %491 : vector<4xf32> to vector<4x1xf32>
    %cst_105 = arith.constant 1.000000e-24 : f32
    %493 = vector.broadcast %cst_105 : f32 to vector<4x1xf32>
    %494 = arith.maximumf %492, %493 : vector<4x1xf32>
    %495 = math.rsqrt %494 : vector<4x1xf32>
    %496 = vector.broadcast %495 : vector<4x1xf32> to vector<4x128xf32>
    %497 = arith.mulf %484, %496 : vector<4x128xf32>
    %c8_i32_106 = arith.constant 8 : i32
    %498 = vector.broadcast %c8_i32_106 : i32 to vector<4x128xi32>
    %499 = arith.cmpi eq, %485, %498 : vector<4x128xi32>
    %500 = arith.negf %484 : vector<4x128xf32>
    %501 = math.exp %500 : vector<4x128xf32>
    %cst_107 = arith.constant 1.000000e+00 : f32
    %502 = vector.broadcast %cst_107 : f32 to vector<4x128xf32>
    %503 = arith.addf %502, %501 : vector<4x128xf32>
    %504 = arith.divf %502, %503 : vector<4x128xf32>
    %cst_108 = arith.constant 0.000000e+00 : f32
    %505 = vector.broadcast %cst_108 : f32 to vector<4x128xf32>
    %506 = arith.select %499, %504, %505 : vector<4x128xi1>, vector<4x128xf32>
    %507 = arith.select %487, %497, %506 : vector<4x128xi1>, vector<4x128xf32>
    %c0_109 = arith.constant 0 : index
    %c0_110 = arith.constant 0 : index
    %508 = vector.load %arg10[%c0_109, %c0_110] : memref<4x128xf32, #tpu.memory_space<vmem>>, vector<4x128xf32>
    tpu.vector_store %arg10[%c0_109, %c0_110], %507 {strides = array<i32>} : memref<4x128xf32, #tpu.memory_space<vmem>>, vector<4x128xf32>,
    return
  }
}

</mosaic_0001>

<llo_original>
// kernel: tpu_custom_call.1
$region0: #{tpu_custom_call.1}
  #allocation0 [shape = 'u32[]', space=smem, size = 0x4, offset = 0x4, fixed_abs, tag = 'smem constant byte address 0x4 - core index']
  #allocation1 [shape = 'u32[144,128]{1,0:T(1,128)}', space=vmem, size = 0x12000, scoped, tag = 'internal scratch']
  %s0 = inlined_call_operand.vmem [shape: f32[32,16], index: 0, kind: input, shape index: {}]
  %s1 = inlined_call_operand.hbm [shape: f32[4,8], index: 1, kind: input, shape index: {}]
  %s2 = inlined_call_operand.vmem [shape: f32[16,32], index: 2, kind: input, shape index: {}]
  %s3 = inlined_call_operand.hbm [shape: f32[3,32], index: 3, kind: input, shape index: {}]
  %s4 = inlined_call_operand.hbm [shape: f32[128,256], index: 4, kind: input, shape index: {}]
  %s5 = inlined_call_operand.vmem [shape: f32[2,128], index: 5, kind: input, shape index: {}]
  %s6 = inlined_call_operand.vmem [shape: f32[32,32], index: 6, kind: input, shape index: {}]
  %s7 = inlined_call_operand.vmem [shape: f32[9,64], index: 7, kind: input, shape index: {}]
  %s8 = inlined_call_operand.hbm [shape: f32[96,128], index: 8, kind: input, shape index: {}]
  %s9 = inlined_call_operand.vmem [shape: f32[4,128], index: 9, kind: input, shape index: {}]
  %s10 = inlined_call_operand.hbm [shape: f32[4,128], index: 10, kind: output, shape index: {}]
  %s11 = sld [smem:[#allocation0]]
  $region66: #{tpu_custom_call.1} parent=0
    _
  %s13 = ssub.s32 1, %s11
  %s14 = scalar_select 0, %s13, %s11
  $region1: #{tpu_custom_call.1} parent=0
    #allocation2 [shape = 'u8[2048]{0}', space=vmem, size = 0x800, scoped, tag = 'input window, operand 1, single buffered']
    #allocation3 [shape = 's32[1]{0}', space=sflag, size = 0x4, scoped, tag = 'scoped memory for tpu_custom_call.1']
    #allocation4 [shape = 's32[1]{0}', space=sflag, size = 0x4, scoped, tag = 'scoped memory for tpu_custom_call.1']
    #allocation5 [shape = 'u8[2048]{0}', space=vmem, size = 0x800, scoped, tag = 'input window, operand 3, single buffered']
    #allocation6 [shape = 's32[1]{0}', space=sflag, size = 0x4, scoped, tag = 'scoped memory for tpu_custom_call.1']
    #allocation7 [shape = 'u8[131072]{0}', space=vmem, size = 0x20000, scoped, tag = 'input window, operand 4, single buffered']
    #allocation8 [shape = 'u8[49152]{0}', space=vmem, size = 0xc000, scoped, tag = 'input window, operand 8, single buffered']
    #allocation9 [shape = 's32[1]{0}', space=sflag, size = 0x4, scoped, tag = 'scoped memory for tpu_custom_call.1']
    #allocation10 [shape = 'u8[2048]{0}', space=vmem, size = 0x800, scoped, tag = 'output window, operand 0, single buffered']
    %15 = vsyncpa [#allocation3], 0
    %16 = vsyncpa [#allocation6], 0
    %17 = vsyncpa [#allocation9], 0
    %18 = vsyncpa [#allocation4], 0
    // Predicated region
    $region2: #{tpu_custom_call.1} parent=1 // pred_check
      _
    $region3: #{tpu_custom_call.1} parent=1 // pred_check_branch
      %20 = sbr.rel (0) target = $region5
    $region4: #{tpu_custom_call.1} parent=1 // pred_region
      _
    $region5: #{tpu_custom_call.1} parent=1 // pred_fallthru
      _
    // Predicated region
    $region6: #{tpu_custom_call.1} parent=1 // pred_check
      _
    $region7: #{tpu_custom_call.1} parent=1 // pred_check_branch
      %22 = sbr.rel (0) target = $region9
    $region8: #{tpu_custom_call.1} parent=1 // pred_region
      %s24 = ssub.s32 64, 64
      %25 = vsyncadd [#allocation3], %s24
      %s27 = sshll.u32 [#allocation2], 4
      %s28 = int_to_ptr.vmem [resolvable:$true] %s27
      %30 = dma.hbm_to_vmem [thread:$0]  %s1, 64, %s28, [#allocation3]
    $region9: #{tpu_custom_call.1} parent=1 // pred_fallthru
      _
    // Predicated region
    $region10: #{tpu_custom_call.1} parent=1 // pred_check
      _
    $region11: #{tpu_custom_call.1} parent=1 // pred_check_branch
      %32 = sbr.rel (0) target = $region13
    $region12: #{tpu_custom_call.1} parent=1 // pred_region
      _
    $region13: #{tpu_custom_call.1} parent=1 // pred_fallthru
      _
    // Predicated region
    $region14: #{tpu_custom_call.1} parent=1 // pred_check
      _
    $region15: #{tpu_custom_call.1} parent=1 // pred_check_branch
      %34 = sbr.rel (0) target = $region17
    $region16: #{tpu_custom_call.1} parent=1 // pred_region
      %s36 = ssub.s32 64, 64
      %37 = vsyncadd [#allocation6], %s36
      %s39 = sshll.u32 [#allocation5], 4
      %s40 = int_to_ptr.vmem [resolvable:$true] %s39
      %42 = dma.hbm_to_vmem [thread:$0]  %s3, 64, %s40, [#allocation6]
    $region17: #{tpu_custom_call.1} parent=1 // pred_fallthru
      _
    // Predicated region
    $region18: #{tpu_custom_call.1} parent=1 // pred_check
      _
    $region19: #{tpu_custom_call.1} parent=1 // pred_check_branch
      %44 = sbr.rel (0) target = $region21
    $region20: #{tpu_custom_call.1} parent=1 // pred_region
      %s46 = ssub.s32 4096, 4096
      %47 = vsyncadd [#allocation6], %s46
      %s48 = sshll.u32 [#allocation7], 4
      %s49 = int_to_ptr.vmem [resolvable:$true] %s48
      %54 = dma.hbm_to_vmem [thread:$0]  %s4, 4096, %s49, [#allocation6], 256, 256, 16
    $region21: #{tpu_custom_call.1} parent=1 // pred_fallthru
      _
    // Predicated region
    $region22: #{tpu_custom_call.1} parent=1 // pred_check
      _
    $region23: #{tpu_custom_call.1} parent=1 // pred_check_branch
      %56 = sbr.rel (0) target = $region25
    $region24: #{tpu_custom_call.1} parent=1 // pred_region
      _
    $region25: #{tpu_custom_call.1} parent=1 // pred_fallthru
      _
    // Predicated region
    $region26: #{tpu_custom_call.1} parent=1 // pred_check
      _
    $region27: #{tpu_custom_call.1} parent=1 // pred_check_branch
      %58 = sbr.rel (0) target = $region29
    $region28: #{tpu_custom_call.1} parent=1 // pred_region
      _
    $region29: #{tpu_custom_call.1} parent=1 // pred_fallthru
      _
    // Predicated region
    $region30: #{tpu_custom_call.1} parent=1 // pred_check
      _
    $region31: #{tpu_custom_call.1} parent=1 // pred_check_branch
      %60 = sbr.rel (0) target = $region33
    $region32: #{tpu_custom_call.1} parent=1 // pred_region
      _
    $region33: #{tpu_custom_call.1} parent=1 // pred_fallthru
      _
    // Predicated region
    $region34: #{tpu_custom_call.1} parent=1 // pred_check
      _
    $region35: #{tpu_custom_call.1} parent=1 // pred_check_branch
      %62 = sbr.rel (0) target = $region37
    $region36: #{tpu_custom_call.1} parent=1 // pred_region
      %s64 = ssub.s32 1536, 1536
      %65 = vsyncadd [#allocation9], %s64
      %s66 = sshll.u32 [#allocation8], 4
      %s67 = int_to_ptr.vmem [resolvable:$true] %s66
      %72 = dma.hbm_to_vmem [thread:$0]  %s8, 1536, %s67, [#allocation9], 128, 128, 8
    $region37: #{tpu_custom_call.1} parent=1 // pred_fallthru
      _
    // Predicated region
    $region38: #{tpu_custom_call.1} parent=1 // pred_check
      _
    $region39: #{tpu_custom_call.1} parent=1 // pred_check_branch
      %74 = sbr.rel (0) target = $region41
    $region40: #{tpu_custom_call.1} parent=1 // pred_region
      _
    $region41: #{tpu_custom_call.1} parent=1 // pred_fallthru
      _
    // Predicated region
    $region42: #{tpu_custom_call.1} parent=1 // pred_check
      _
    $region43: #{tpu_custom_call.1} parent=1 // pred_check_branch
      %76 = sbr.rel (0) target = $region45
    $region44: #{tpu_custom_call.1} parent=1 // pred_region
      %77 = dma.done [#allocation3], 64
    $region45: #{tpu_custom_call.1} parent=1 // pred_fallthru
      _
    // Predicated region
    $region46: #{tpu_custom_call.1} parent=1 // pred_check
      _
    $region47: #{tpu_custom_call.1} parent=1 // pred_check_branch
      %79 = sbr.rel (0) target = $region49
    $region48: #{tpu_custom_call.1} parent=1 // pred_region
      %80 = dma.done [#allocation6], 64
    $region49: #{tpu_custom_call.1} parent=1 // pred_fallthru
      _
    // Predicated region
    $region50: #{tpu_custom_call.1} parent=1 // pred_check
      _
    $region51: #{tpu_custom_call.1} parent=1 // pred_check_branch
      %82 = sbr.rel (0) target = $region53
    $region52: #{tpu_custom_call.1} parent=1 // pred_region
      %83 = dma.done [#allocation6], 4096
    $region53: #{tpu_custom_call.1} parent=1 // pred_fallthru
      _
    // Predicated region
    $region54: #{tpu_custom_call.1} parent=1 // pred_check
      _
    $region55: #{tpu_custom_call.1} parent=1 // pred_check_branch
      %85 = sbr.rel (0) target = $region57
    $region56: #{tpu_custom_call.1} parent=1 // pred_region
      %86 = dma.done [#allocation9], 1536
    $region57: #{tpu_custom_call.1} parent=1 // pred_fallthru
      _
    %v88 = vld [vmem:[%s0] sm:$0xff]
    %v89 = vld [vmem:[%s0 + $0x8] sm:$0xff]
    %v90 = vld [vmem:[%s0 + $0x10] sm:$0xff]
    %v91 = vld [vmem:[%s0 + $0x18] sm:$0xff]
    %v92 = vld [vmem:[#allocation5] sm:$0x7]
    %v93 = vld [vmem:[%s2] sm:$0xff]
    %v94 = vld [vmem:[%s2 + $0x8] sm:$0xff]
    %v95 = vlaneseq
    %v96 = vshrl.u32 %v95, 7
    %v97 = vsub.s32 0, %v96
    %v98 = vrot.slane %v92, %v97
    %vm99 = vcmask 130048
    %v101 = vsel %vm99, %v88, 0
    %v104 = vsel %vm99, %v89, 0
    %v107 = vsel %vm99, %v90, 0
    %v110 = vsel %vm99, %v91, 0
    %112 = vmatprep.subr.mxu0 0.0
    %113 = vmatpush1.msra.mxu0 %v93
    %114 = vmatprep.subr.mxu0 0.0
    %115 = vmatpush1.msra.mxu0 %v94
    %116 = vmatprep.subr.mxu0 0.0
    %117 = vmatpush1.msra.mxu0 0.0
    %118 = vmatprep.subr.mxu0 0.0
    %119 = vmatpush1.msra.mxu0 0.0
    %120 = vmatprep.subr.mxu0 0.0
    %121 = vmatpush1.msra.mxu0 0.0
    %122 = vmatprep.subr.mxu0 0.0
    %123 = vmatpush1.msra.mxu0 0.0
    %124 = vmatprep.subr.mxu0 0.0
    %125 = vmatpush1.msra.mxu0 0.0
    %126 = vmatprep.subr.mxu0 0.0
    %127 = vmatpush1.msra.mxu0 0.0
    %128 = vmatprep.subr.mxu0 0.0
    %129 = vmatpush1.msra.mxu0 0.0
    %130 = vmatprep.subr.mxu0 0.0
    %131 = vmatpush1.msra.mxu0 0.0
    %132 = vmatprep.subr.mxu0 0.0
    %133 = vmatpush1.msra.mxu0 0.0
    %134 = vmatprep.subr.mxu0 0.0
    %135 = vmatpush1.msra.mxu0 0.0
    %136 = vmatprep.subr.mxu0 0.0
    %137 = vmatpush1.msra.mxu0 0.0
    %138 = vmatprep.subr.mxu0 0.0
    %139 = vmatpush1.msra.mxu0 0.0
    %140 = vmatprep.subr.mxu0 0.0
    %141 = vmatpush1.msra.mxu0 0.0
    %142 = vmatprep.subr.mxu0 0.0
    %143 = vmatpush1.msra.mxu0 0.0
    %144 = vmatprep.subr.mxu0 0.0
    %145 = vmatpush1.msra.mxu0 0.0
    %146 = vmatprep.subr.mxu0 0.0
    %147 = vmatpush1.msra.mxu0 0.0
    %148 = vmatprep.subr.mxu0 0.0
    %149 = vmatpush1.msra.mxu0 0.0
    %150 = vmatprep.subr.mxu0 0.0
    %151 = vmatpush1.msra.mxu0 0.0
    %152 = vmatprep.subr.mxu0 0.0
    %153 = vmatpush1.msra.mxu0 0.0
    %154 = vmatprep.subr.mxu0 0.0
    %155 = vmatpush1.msra.mxu0 0.0
    %156 = vmatprep.subr.mxu0 0.0
    %157 = vmatpush1.msra.mxu0 0.0
    %158 = vmatprep.subr.mxu0 0.0
    %159 = vmatpush1.msra.mxu0 0.0
    %160 = vmatprep.subr.mxu0 0.0
    %161 = vmatpush1.msra.mxu0 0.0
    %162 = vmatprep.subr.mxu0 0.0
    %163 = vmatpush1.msra.mxu0 0.0
    %164 = vmatprep.subr.mxu0 0.0
    %165 = vmatpush1.msra.mxu0 0.0
    %166 = vmatprep.subr.mxu0 0.0
    %167 = vmatpush1.msra.mxu0 0.0
    %168 = vmatprep.subr.mxu0 0.0
    %169 = vmatpush1.msra.mxu0 0.0
    %170 = vmatprep.subr.mxu0 0.0
    %171 = vmatpush1.msra.mxu0 0.0
    %172 = vmatprep.subr.mxu0 0.0
    %173 = vmatpush1.msra.mxu0 0.0
    %174 = vmatprep.subr.mxu0 0.0
    %175 = vmatpush1.msra.mxu0 0.0
    %176 = vmatprep.mubr.f32.mxu0 0.0
    %177 = vmatmul.mubr.f32.gmra.mrb[0].mxu0 %v101
    %v178 = vpop.f32.mrb[0].mxu0
    %v179 = vadd.f32 %v98, %v178
    %v180 = vpop.f32.mrb[0].mxu0
    %181 = vmatprep.mubr.f32.mxu0 0.0
    %182 = vmatmul.mubr.f32.gmra.mrb[0].mxu0 %v104
    %v183 = vpop.f32.mrb[0].mxu0
    %v184 = vadd.f32 %v98, %v183
    %v185 = vpop.f32.mrb[0].mxu0
    %186 = vmatprep.mubr.f32.mxu0 0.0
    %187 = vmatmul.mubr.f32.gmra.mrb[0].mxu0 %v107
    %v188 = vpop.f32.mrb[0].mxu0
    %v189 = vadd.f32 %v98, %v188
    %v190 = vpop.f32.mrb[0].mxu0
    %191 = vmatprep.mubr.f32.mxu0 0.0
    %192 = vmatmul.mubr.f32.gmra.mrb[0].mxu0 %v110
    %v193 = vpop.f32.mrb[0].mxu0
    %v194 = vadd.f32 %v98, %v193
    %v195 = vpop.f32.mrb[0].mxu0
    %196 = vdwg.mxu0
    %vm197 = vcmask 261120
    %v198 = vsel %vm197, %v179, 0.0
    %v199 = vsel %vm197, %v184, 0.0
    %v200 = vadd.f32 %v198, %v199
    %v201 = vsel %vm197, %v189, 0.0
    %v202 = vadd.f32 %v200, %v201
    %v203 = vsel %vm197, %v194, 0.0
    %v204 = vadd.f32 %v202, %v203
    %v205 = vrot.slane %v204, 4
    %v206 = vadd.f32 %v204, %v205
    %v207 = vrot.slane %v206, 2
    %v208 = vadd.f32 %v206, %v207
    %v209 = vrot.slane %v208, 1
    %v210 = vadd.f32 %v208, %v209
    %v211 = vrcp.pop 32.0
    %v212 = vmul.f32 %v210, %v211
    %v213 = vmul.f32 %v179, %v179
    %v214 = vmul.f32 %v184, %v184
    %v215 = vmul.f32 %v189, %v189
    %v216 = vmul.f32 %v194, %v194
    %v217 = vsel %vm197, %v213, 0.0
    %v218 = vsel %vm197, %v214, 0.0
    %v219 = vadd.f32 %v217, %v218
    %v220 = vsel %vm197, %v215, 0.0
    %v221 = vadd.f32 %v219, %v220
    %v222 = vsel %vm197, %v216, 0.0
    %v223 = vadd.f32 %v221, %v222
    %v224 = vrot.slane %v223, 4
    %v225 = vadd.f32 %v223, %v224
    %v226 = vrot.slane %v225, 2
    %v227 = vadd.f32 %v225, %v226
    %v228 = vrot.slane %v227, 1
    %v229 = vadd.f32 %v227, %v228
    %v230 = vmul.f32 %v229, %v211
    %v231 = vmul.f32 %v212, %v212
    %v232 = vsub.f32 %v230, %v231
    %v233 = vsub.f32 %v179, %v212
    %v234 = vsub.f32 %v184, %v212
    %v235 = vsub.f32 %v189, %v212
    %v236 = vsub.f32 %v194, %v212
    %v237 = vadd.f32 %v232, 1e-05
    %v238 = vrsqrt.pop %v237
    %v239 = vmul.f32 %v233, %v238
    %v240 = vmul.f32 %v234, %v238
    %v241 = vmul.f32 %v235, %v238
    %v242 = vmul.f32 %v236, %v238
    %v243 = vlaneseq
    %v244 = vshrl.u32 %v243, 7
    %v245 = vsub.s32 1, %v244
    %v246 = vrot.slane %v92, %v245
    %v247 = vmul.f32 %v239, %v246
    %v248 = vmul.f32 %v240, %v246
    %v249 = vmul.f32 %v241, %v246
    %v250 = vmul.f32 %v242, %v246
    %v251 = vlaneseq
    %v252 = vshrl.u32 %v251, 7
    %v253 = vsub.s32 2, %v252
    %v254 = vrot.slane %v92, %v253
    %v255 = vadd.f32 %v247, %v254
    %v256 = vadd.f32 %v248, %v254
    %v257 = vadd.f32 %v249, %v254
    %v258 = vadd.f32 %v250, %v254
    %v259 = vmax.f32 %v255, 0.0
    %v260 = vmax.f32 %v256, 0.0
    %v261 = vmax.f32 %v257, 0.0
    %v262 = vmax.f32 %v258, 0.0
    %v263 = vld [vmem:[#allocation7] sm:$0xff]
    %v264 = vld [vmem:[#allocation7 + $0x10] sm:$0xff]
    %v265 = vld [vmem:[#allocation7 + $0x20] sm:$0xff]
    %v266 = vld [vmem:[#allocation7 + $0x30] sm:$0xff]
    %v267 = vld [vmem:[#allocation7 + $0x40] sm:$0xff]
    %v268 = vld [vmem:[#allocation7 + $0x48] sm:$0xff]
    %v269 = vld [vmem:[#allocation7 + $0x50] sm:$0xff]
    %v270 = vld [vmem:[#allocation7 + $0x58] sm:$0xff]
    %v271 = vld [vmem:[#allocation7 + $0x60] sm:$0xff]
    %v272 = vld [vmem:[#allocation7 + $0x68] sm:$0xff]
    %v273 = vld [vmem:[#allocation7 + $0x70] sm:$0xff]
    %v274 = vld [vmem:[#allocation7 + $0x78] sm:$0xff]
    %v275 = vld [vmem:[#allocation7 + $0x80] sm:$0xff]
    %v276 = vld [vmem:[#allocation7 + $0x88] sm:$0xff]
    %v277 = vld [vmem:[#allocation7 + $0x90] sm:$0xff]
    %v278 = vld [vmem:[#allocation7 + $0x98] sm:$0xff]
    %v279 = vld [vmem:[#allocation7 + $0xa0] sm:$0xff]
    %v280 = vld [vmem:[#allocation7 + $0xa8] sm:$0xff]
    %v281 = vld [vmem:[#allocation7 + $0xb0] sm:$0xff]
    %v282 = vld [vmem:[#allocation7 + $0xb8] sm:$0xff]
    %v283 = vld [vmem:[#allocation7 + $0xc0] sm:$0xff]
    %v284 = vld [vmem:[#allocation7 + $0xd0] sm:$0xff]
    %v285 = vld [vmem:[#allocation7 + $0xe0] sm:$0xff]
    %v286 = vld [vmem:[#allocation7 + $0xf0] sm:$0xff]
    %v287 = vld [vmem:[%s5] sm:$0x3]
    %v288 = vlaneseq
    %v289 = vshrl.u32 %v288, 7
    %v290 = vsub.s32 0, %v289
    %v291 = vrot.slane %v287, %v290
    %v293 = vsel %vm197, %v259, 0
    %v296 = vsel %vm197, %v260, 0
    %v299 = vsel %vm197, %v261, 0
    %v302 = vsel %vm197, %v262, 0
    %304 = vmatprep.subr.mxu0 0.0
    %305 = vmatpush1.msra.mxu0 %v263
    %306 = vmatprep.subr.mxu0 0.0
    %307 = vmatpush1.msra.mxu0 %v264
    %308 = vmatprep.subr.mxu0 0.0
    %309 = vmatpush1.msra.mxu0 %v265
    %310 = vmatprep.subr.mxu0 0.0
    %311 = vmatpush1.msra.mxu0 %v266
    %312 = vmatprep.subr.mxu0 0.0
    %313 = vmatpush1.msra.mxu0 0.0
    %314 = vmatprep.subr.mxu0 0.0
    %315 = vmatpush1.msra.mxu0 0.0
    %316 = vmatprep.subr.mxu0 0.0
    %317 = vmatpush1.msra.mxu0 0.0
    %318 = vmatprep.subr.mxu0 0.0
    %319 = vmatpush1.msra.mxu0 0.0
    %320 = vmatprep.subr.mxu0 0.0
    %321 = vmatpush1.msra.mxu0 0.0
    %322 = vmatprep.subr.mxu0 0.0
    %323 = vmatpush1.msra.mxu0 0.0
    %324 = vmatprep.subr.mxu0 0.0
    %325 = vmatpush1.msra.mxu0 0.0
    %326 = vmatprep.subr.mxu0 0.0
    %327 = vmatpush1.msra.mxu0 0.0
    %328 = vmatprep.subr.mxu0 0.0
    %329 = vmatpush1.msra.mxu0 0.0
    %330 = vmatprep.subr.mxu0 0.0
    %331 = vmatpush1.msra.mxu0 0.0
    %332 = vmatprep.subr.mxu0 0.0
    %333 = vmatpush1.msra.mxu0 0.0
    %334 = vmatprep.subr.mxu0 0.0
    %335 = vmatpush1.msra.mxu0 0.0
    %336 = vmatprep.subr.mxu0 0.0
    %337 = vmatpush1.msra.mxu0 0.0
    %338 = vmatprep.subr.mxu0 0.0
    %339 = vmatpush1.msra.mxu0 0.0
    %340 = vmatprep.subr.mxu0 0.0
    %341 = vmatpush1.msra.mxu0 0.0
    %342 = vmatprep.subr.mxu0 0.0
    %343 = vmatpush1.msra.mxu0 0.0
    %344 = vmatprep.subr.mxu0 0.0
    %345 = vmatpush1.msra.mxu0 0.0
    %346 = vmatprep.subr.mxu0 0.0
    %347 = vmatpush1.msra.mxu0 0.0
    %348 = vmatprep.subr.mxu0 0.0
    %349 = vmatpush1.msra.mxu0 0.0
    %350 = vmatprep.subr.mxu0 0.0
    %351 = vmatpush1.msra.mxu0 0.0
    %352 = vmatprep.subr.mxu0 0.0
    %353 = vmatpush1.msra.mxu0 0.0
    %354 = vmatprep.subr.mxu0 0.0
    %355 = vmatpush1.msra.mxu0 0.0
    %356 = vmatprep.subr.mxu0 0.0
    %357 = vmatpush1.msra.mxu0 0.0
    %358 = vmatprep.subr.mxu0 0.0
    %359 = vmatpush1.msra.mxu0 0.0
    %360 = vmatprep.subr.mxu0 0.0
    %361 = vmatpush1.msra.mxu0 0.0
    %362 = vmatprep.subr.mxu0 0.0
    %363 = vmatpush1.msra.mxu0 0.0
    %364 = vmatprep.subr.mxu0 0.0
    %365 = vmatpush1.msra.mxu0 0.0
    %366 = vmatprep.subr.mxu0 0.0
    %367 = vmatpush1.msra.mxu0 0.0
    %368 = vmatprep.mubr.f32.mxu0 0.0
    %369 = vmatmul.mubr.f32.gmra.mrb[0].mxu0 %v293
    %v370 = vpop.f32.mrb[0].mxu0
    %v371 = vadd.f32 %v291, %v370
    %v372 = vpop.f32.mrb[0].mxu0
    %373 = vmatprep.mubr.f32.mxu0 0.0
    %374 = vmatmul.mubr.f32.gmra.mrb[0].mxu0 %v296
    %v375 = vpop.f32.mrb[0].mxu0
    %v376 = vadd.f32 %v291, %v375
    %v377 = vpop.f32.mrb[0].mxu0
    %378 = vmatprep.mubr.f32.mxu0 0.0
    %379 = vmatmul.mubr.f32.gmra.mrb[0].mxu0 %v299
    %v380 = vpop.f32.mrb[0].mxu0
    %v381 = vadd.f32 %v291, %v380
    %v382 = vpop.f32.mrb[0].mxu0
    %383 = vmatprep.mubr.f32.mxu0 0.0
    %384 = vmatmul.mubr.f32.gmra.mrb[0].mxu0 %v302
    %v385 = vpop.f32.mrb[0].mxu0
    %v386 = vadd.f32 %v291, %v385
    %v387 = vpop.f32.mrb[0].mxu0
    %388 = vdwg.mxu0
    %v389 = vpack.c.bf16 %v269, %v267
    %v390 = vpack.c.bf16 %v270, %v268
    %v391 = vpack.c.bf16 %v273, %v271
    %v392 = vpack.c.bf16 %v274, %v272
    %v393 = vpack.c.bf16 %v277, %v275
    %v394 = vpack.c.bf16 %v278, %v276
    %v395 = vpack.c.bf16 %v281, %v279
    %v396 = vpack.c.bf16 %v282, %v280
    %v397 = vpack.c.bf16 %v284, %v283
    %v398 = vpack.c.bf16 %v286, %v285
    %v399 = vpack.c.bf16 0.0, 0.0
    %vm400 = vcmask 523264
    %v402 = vsel %vm400, %v399, 0
    %404 = vmatprep.subr.bf16.mxu0 %v390
    %405 = vmatpush1.bf16.msra.mxu0 %v389
    %406 = vmatprep.subr.bf16.mxu0 %v392
    %407 = vmatpush1.bf16.msra.mxu0 %v391
    %408 = vmatprep.subr.bf16.mxu0 %v394
    %409 = vmatpush1.bf16.msra.mxu0 %v393
    %410 = vmatprep.subr.bf16.mxu0 %v396
    %411 = vmatpush1.bf16.msra.mxu0 %v395
    %412 = vmatprep.subr.bf16.mxu0 0
    %413 = vmatpush1.bf16.msra.mxu0 0
    %414 = vmatprep.subr.bf16.mxu0 0
    %415 = vmatpush1.bf16.msra.mxu0 0
    %416 = vmatprep.subr.bf16.mxu0 0
    %417 = vmatpush1.bf16.msra.mxu0 0
    %418 = vmatprep.subr.bf16.mxu0 0
    %419 = vmatpush1.bf16.msra.mxu0 0
    %420 = vmatprep.subr.bf16.mxu0 0
    %421 = vmatpush1.bf16.msra.mxu0 0
    %422 = vmatprep.subr.bf16.mxu0 0
    %423 = vmatpush1.bf16.msra.mxu0 0
    %424 = vmatprep.subr.bf16.mxu0 0
    %425 = vmatpush1.bf16.msra.mxu0 0
    %426 = vmatprep.subr.bf16.mxu0 0
    %427 = vmatpush1.bf16.msra.mxu0 0
    %428 = vmatprep.subr.bf16.mxu0 0
    %429 = vmatpush1.bf16.msra.mxu0 0
    %430 = vmatprep.subr.bf16.mxu0 0
    %431 = vmatpush1.bf16.msra.mxu0 0
    %432 = vmatprep.subr.bf16.mxu0 0
    %433 = vmatpush1.bf16.msra.mxu0 0
    %434 = vmatprep.subr.bf16.mxu0 0
    %435 = vmatpush1.bf16.msra.mxu0 0
    %436 = vmatprep.mubr.bf16.mxu0 0
    %437 = vmatmul.mubr.bf16.gmra.mrb[0].mxu0 %v402
    %v438 = vpop.f32.mrb[0].mxu0
    %v439 = vadd.f32 0.0, %v438
    %v440 = vpop.f32.mrb[0].mxu0
    %v441 = vadd.f32 0.0, %v440
    %v442 = vpop.f32.mrb[0].mxu0
    %v443 = vpop.f32.mrb[0].mxu0
    %444 = vdwg.mxu0
    %v445 = vadd.f32 %v371, %v439
    %v446 = vxor.u32 %v445, 2147483648
    %v447 = vmul.f32 %v446, 1.442695
    %v448 = vpow.pop %v447
    %v449 = vadd.f32 %v448, 1.0
    %v450 = vrcp.pop %v449
    %v451 = vmul.f32 1.0, %v450
    %v452 = vmul.f32 %v451, 2.0
    %v453 = vsub.f32 %v452, 1.0
    %v454 = vmul.f32 %v451, 0.0
    %456 = vrot.lane.b32.xlu0 %v453, 64
    %v457 = vpop.permute.xlu0 %456
    %v459 = vmul.f32 %v451, %v457
    %461 = vrot.lane.b32.xlu0 %v459, 32
    %v462 = vpop.permute.xlu0 %461
    %v464 = vadd.f32 %v454, %v462
    %v465 = vtanh.pop %v464
    %467 = vrot.lane.b32.xlu0 %v465, 64
    %v468 = vpop.permute.xlu0 %467
    %v470 = vmul.f32 %v451, %v468
    %v471 = vpack.c.bf16 %v470, %v470
    %473 = vrot.lane.b32.xlu0 %v471, 32
    %v474 = vpop.permute.xlu0 %473
    %v476 = vsel %vm197, %v474, 0
    %478 = vmatprep.subr.bf16.mxu0 0
    %479 = vmatpush1.bf16.msra.mxu0 %v397
    %480 = vmatprep.subr.bf16.mxu0 0
    %481 = vmatpush1.bf16.msra.mxu0 %v398
    %482 = vmatprep.subr.bf16.mxu0 0
    %483 = vmatpush1.bf16.msra.mxu0 0
    %484 = vmatprep.subr.bf16.mxu0 0
    %485 = vmatpush1.bf16.msra.mxu0 0
    %486 = vmatprep.subr.bf16.mxu0 0
    %487 = vmatpush1.bf16.msra.mxu0 0
    %488 = vmatprep.subr.bf16.mxu0 0
    %489 = vmatpush1.bf16.msra.mxu0 0
    %490 = vmatprep.subr.bf16.mxu0 0
    %491 = vmatpush1.bf16.msra.mxu0 0
    %492 = vmatprep.subr.bf16.mxu0 0
    %493 = vmatpush1.bf16.msra.mxu0 0
    %494 = vmatprep.subr.bf16.mxu0 0
    %495 = vmatpush1.bf16.msra.mxu0 0
    %496 = vmatprep.subr.bf16.mxu0 0
    %497 = vmatpush1.bf16.msra.mxu0 0
    %498 = vmatprep.subr.bf16.mxu0 0
    %499 = vmatpush1.bf16.msra.mxu0 0
    %500 = vmatprep.subr.bf16.mxu0 0
    %501 = vmatpush1.bf16.msra.mxu0 0
    %502 = vmatprep.subr.bf16.mxu0 0
    %503 = vmatpush1.bf16.msra.mxu0 0
    %504 = vmatprep.subr.bf16.mxu0 0
    %505 = vmatpush1.bf16.msra.mxu0 0
    %506 = vmatprep.subr.bf16.mxu0 0
    %507 = vmatpush1.bf16.msra.mxu0 0
    %508 = vmatprep.subr.bf16.mxu0 0
    %509 = vmatpush1.bf16.msra.mxu0 0
    %510 = vmatprep.mubr.bf16.mxu0 0
    %511 = vmatmul.mubr.bf16.gmra.mrb[0].mxu0 %v476
    %v512 = vpop.f32.mrb[0].mxu0
    %v513 = vadd.f32 %v441, %v512
    %v514 = vpop.f32.mrb[0].mxu0
    %v515 = vpop.f32.mrb[0].mxu0
    %v516 = vpop.f32.mrb[0].mxu0
    %517 = vdwg.mxu0
    %v518 = vlaneseq
    %v519 = vshrl.u32 %v518, 7
    %v520 = vsub.s32 1, %v519
    %v521 = vrot.slane %v287, %v520
    %v522 = vadd.f32 %v513, %v521
    %v523 = vxor.u32 %v522, 2147483648
    %v524 = vmul.f32 %v523, 1.442695
    %v525 = vpow.pop %v524
    %v526 = vadd.f32 %v525, 1.0
    %v527 = vrcp.pop %v526
    %v528 = vmul.f32 1.0, %v527
    %v529 = vmul.f32 %v528, 2.0
    %v530 = vsub.f32 %v529, 1.0
    %v531 = vmul.f32 %v528, 0.0
    %533 = vrot.lane.b32.xlu0 %v530, 64
    %v534 = vpop.permute.xlu0 %533
    %v536 = vmul.f32 %v528, %v534
    %538 = vrot.lane.b32.xlu0 %v536, 32
    %v539 = vpop.permute.xlu0 %538
    %v541 = vadd.f32 %v531, %v539
    %v542 = vtanh.pop %v541
    %544 = vrot.lane.b32.xlu0 %v542, 64
    %v545 = vpop.permute.xlu0 %544
    %v547 = vmul.f32 %v528, %v545
    %549 = vrot.lane.b32.xlu0 %v470, 32
    %v550 = vpop.permute.xlu0 %549
    %553 = vrot.lane.b32.xlu0 %v547, 64
    %v554 = vpop.permute.xlu0 %553
    %v556 = vsel %vm197, %v550, %v554
    %v557 = vpack.c.bf16 %v556, %v556
    %v559 = vsel %vm400, %v557, 0
    %561 = vmatprep.subr.bf16.mxu0 %v390
    %562 = vmatpush1.bf16.msra.mxu0 %v389
    %563 = vmatprep.subr.bf16.mxu0 %v392
    %564 = vmatpush1.bf16.msra.mxu0 %v391
    %565 = vmatprep.subr.bf16.mxu0 %v394
    %566 = vmatpush1.bf16.msra.mxu0 %v393
    %567 = vmatprep.subr.bf16.mxu0 %v396
    %568 = vmatpush1.bf16.msra.mxu0 %v395
    %569 = vmatprep.subr.bf16.mxu0 0
    %570 = vmatpush1.bf16.msra.mxu0 0
    %571 = vmatprep.subr.bf16.mxu0 0
    %572 = vmatpush1.bf16.msra.mxu0 0
    %573 = vmatprep.subr.bf16.mxu0 0
    %574 = vmatpush1.bf16.msra.mxu0 0
    %575 = vmatprep.subr.bf16.mxu0 0
    %576 = vmatpush1.bf16.msra.mxu0 0
    %577 = vmatprep.subr.bf16.mxu0 0
    %578 = vmatpush1.bf16.msra.mxu0 0
    %579 = vmatprep.subr.bf16.mxu0 0
    %580 = vmatpush1.bf16.msra.mxu0 0
    %581 = vmatprep.subr.bf16.mxu0 0
    %582 = vmatpush1.bf16.msra.mxu0 0
    %583 = vmatprep.subr.bf16.mxu0 0
    %584 = vmatpush1.bf16.msra.mxu0 0
    %585 = vmatprep.subr.bf16.mxu0 0
    %586 = vmatpush1.bf16.msra.mxu0 0
    %587 = vmatprep.subr.bf16.mxu0 0
    %588 = vmatpush1.bf16.msra.mxu0 0
    %589 = vmatprep.subr.bf16.mxu0 0
    %590 = vmatpush1.bf16.msra.mxu0 0
    %591 = vmatprep.subr.bf16.mxu0 0
    %592 = vmatpush1.bf16.msra.mxu0 0
    %593 = vmatprep.mubr.bf16.mxu0 0
    %594 = vmatmul.mubr.bf16.gmra.mrb[0].mxu0 %v559
    %v595 = vpop.f32.mrb[0].mxu0
    %v596 = vadd.f32 0.0, %v595
    %v597 = vpop.f32.mrb[0].mxu0
    %v598 = vadd.f32 0.0, %v597
    %v599 = vpop.f32.mrb[0].mxu0
    %v600 = vpop.f32.mrb[0].mxu0
    %601 = vdwg.mxu0
    %v603 = vrot.slane %v596, 4
    %v605 = vadd.f32 %v371, %v603
    %v606 = vxor.u32 %v605, 2147483648
    %v607 = vmul.f32 %v606, 1.442695
    %v608 = vpow.pop %v607
    %v609 = vadd.f32 %v608, 1.0
    %v610 = vrcp.pop %v609
    %v611 = vmul.f32 1.0, %v610
    %v612 = vmul.f32 %v611, 2.0
    %v613 = vsub.f32 %v612, 1.0
    %v615 = vrot.slane %v464, 4
    %v617 = vmul.f32 %v611, %v615
    %619 = vrot.lane.b32.xlu0 %v613, 64
    %v620 = vpop.permute.xlu0 %619
    %v622 = vmul.f32 %v611, %v620
    %624 = vrot.lane.b32.xlu0 %v622, 32
    %v625 = vpop.permute.xlu0 %624
    %v627 = vadd.f32 %v617, %v625
    %v628 = vtanh.pop %v627
    %630 = vrot.lane.b32.xlu0 %v628, 64
    %v631 = vpop.permute.xlu0 %630
    %v633 = vmul.f32 %v611, %v631
    %v634 = vpack.c.bf16 %v633, %v633
    %v636 = vrot.slane %v634, 2
    %637 = vrot.lane.b32.xlu0 %v636, 32
    %v638 = vpop.permute.xlu0 %637
    %v640 = vsel %vm197, %v638, 0
    %642 = vmatprep.subr.bf16.mxu0 0
    %643 = vmatpush1.bf16.msra.mxu0 %v397
    %644 = vmatprep.subr.bf16.mxu0 0
    %645 = vmatpush1.bf16.msra.mxu0 %v398
    %646 = vmatprep.subr.bf16.mxu0 0
    %647 = vmatpush1.bf16.msra.mxu0 0
    %648 = vmatprep.subr.bf16.mxu0 0
    %649 = vmatpush1.bf16.msra.mxu0 0
    %650 = vmatprep.subr.bf16.mxu0 0
    %651 = vmatpush1.bf16.msra.mxu0 0
    %652 = vmatprep.subr.bf16.mxu0 0
    %653 = vmatpush1.bf16.msra.mxu0 0
    %654 = vmatprep.subr.bf16.mxu0 0
    %655 = vmatpush1.bf16.msra.mxu0 0
    %656 = vmatprep.subr.bf16.mxu0 0
    %657 = vmatpush1.bf16.msra.mxu0 0
    %658 = vmatprep.subr.bf16.mxu0 0
    %659 = vmatpush1.bf16.msra.mxu0 0
    %660 = vmatprep.subr.bf16.mxu0 0
    %661 = vmatpush1.bf16.msra.mxu0 0
    %662 = vmatprep.subr.bf16.mxu0 0
    %663 = vmatpush1.bf16.msra.mxu0 0
    %664 = vmatprep.subr.bf16.mxu0 0
    %665 = vmatpush1.bf16.msra.mxu0 0
    %666 = vmatprep.subr.bf16.mxu0 0
    %667 = vmatpush1.bf16.msra.mxu0 0
    %668 = vmatprep.subr.bf16.mxu0 0
    %669 = vmatpush1.bf16.msra.mxu0 0
    %670 = vmatprep.subr.bf16.mxu0 0
    %671 = vmatpush1.bf16.msra.mxu0 0
    %672 = vmatprep.subr.bf16.mxu0 0
    %673 = vmatpush1.bf16.msra.mxu0 0
    %674 = vmatprep.mubr.bf16.mxu0 0
    %675 = vmatmul.mubr.bf16.gmra.mrb[0].mxu0 %v640
    %v676 = vpop.f32.mrb[0].mxu0
    %v677 = vadd.f32 %v598, %v676
    %v678 = vpop.f32.mrb[0].mxu0
    %v679 = vpop.f32.mrb[0].mxu0
    %v680 = vpop.f32.mrb[0].mxu0
    %681 = vdwg.mxu0
    %v682 = vadd.f32 %v677, %v521
    %v683 = vxor.u32 %v682, 2147483648
    %v684 = vmul.f32 %v683, 1.442695
    %v685 = vpow.pop %v684
    %v686 = vadd.f32 %v685, 1.0
    %v687 = vrcp.pop %v686
    %v688 = vmul.f32 1.0, %v687
    %v689 = vmul.f32 %v688, 2.0
    %v690 = vsub.f32 %v689, 1.0
    %v691 = vmul.f32 %v688, %v541
    %693 = vrot.lane.b32.xlu0 %v690, 64
    %v694 = vpop.permute.xlu0 %693
    %v696 = vmul.f32 %v688, %v694
    %698 = vrot.lane.b32.xlu0 %v696, 32
    %v699 = vpop.permute.xlu0 %698
    %v701 = vadd.f32 %v691, %v699
    %v702 = vtanh.pop %v701
    %704 = vrot.lane.b32.xlu0 %v702, 64
    %v705 = vpop.permute.xlu0 %704
    %v707 = vmul.f32 %v688, %v705
    %709 = vrot.lane.b32.xlu0 %v633, 32
    %v710 = vpop.permute.xlu0 %709
    %v713 = vrot.slane %v707, 4
    %714 = vrot.lane.b32.xlu0 %v713, 64
    %v715 = vpop.permute.xlu0 %714
    %v717 = vsel %vm197, %v710, %v715
    %v718 = vpack.c.bf16 %v717, %v717
    %v720 = vrot.slane %v718, 2
    %v722 = vsel %vm400, %v720, 0
    %724 = vmatprep.subr.bf16.mxu0 %v390
    %725 = vmatpush1.bf16.msra.mxu0 %v389
    %726 = vmatprep.subr.bf16.mxu0 %v392
    %727 = vmatpush1.bf16.msra.mxu0 %v391
    %728 = vmatprep.subr.bf16.mxu0 %v394
    %729 = vmatpush1.bf16.msra.mxu0 %v393
    %730 = vmatprep.subr.bf16.mxu0 %v396
    %731 = vmatpush1.bf16.msra.mxu0 %v395
    %732 = vmatprep.subr.bf16.mxu0 0
    %733 = vmatpush1.bf16.msra.mxu0 0
    %734 = vmatprep.subr.bf16.mxu0 0
    %735 = vmatpush1.bf16.msra.mxu0 0
    %736 = vmatprep.subr.bf16.mxu0 0
    %737 = vmatpush1.bf16.msra.mxu0 0
    %738 = vmatprep.subr.bf16.mxu0 0
    %739 = vmatpush1.bf16.msra.mxu0 0
    %740 = vmatprep.subr.bf16.mxu0 0
    %741 = vmatpush1.bf16.msra.mxu0 0
    %742 = vmatprep.subr.bf16.mxu0 0
    %743 = vmatpush1.bf16.msra.mxu0 0
    %744 = vmatprep.subr.bf16.mxu0 0
    %745 = vmatpush1.bf16.msra.mxu0 0
    %746 = vmatprep.subr.bf16.mxu0 0
    %747 = vmatpush1.bf16.msra.mxu0 0
    %748 = vmatprep.subr.bf16.mxu0 0
    %749 = vmatpush1.bf16.msra.mxu0 0
    %750 = vmatprep.subr.bf16.mxu0 0
    %751 = vmatpush1.bf16.msra.mxu0 0
    %752 = vmatprep.subr.bf16.mxu0 0
    %753 = vmatpush1.bf16.msra.mxu0 0
    %754 = vmatprep.subr.bf16.mxu0 0
    %755 = vmatpush1.bf16.msra.mxu0 0
    %756 = vmatprep.mubr.bf16.mxu0 0
    %757 = vmatmul.mubr.bf16.gmra.mrb[0].mxu0 %v722
    %v758 = vpop.f32.mrb[0].mxu0
    %v759 = vadd.f32 0.0, %v758
    %v760 = vpop.f32.mrb[0].mxu0
    %v761 = vadd.f32 0.0, %v760
    %v762 = vpop.f32.mrb[0].mxu0
    %v763 = vpop.f32.mrb[0].mxu0
    %764 = vdwg.mxu0
    %v765 = vadd.f32 %v376, %v759
    %v766 = vxor.u32 %v765, 2147483648
    %v767 = vmul.f32 %v766, 1.442695
    %v768 = vpow.pop %v767
    %v769 = vadd.f32 %v768, 1.0
    %v770 = vrcp.pop %v769
    %v771 = vmul.f32 1.0, %v770
    %v772 = vmul.f32 %v771, 2.0
    %v773 = vsub.f32 %v772, 1.0
    %v775 = vrot.slane %v627, 4
    %v777 = vmul.f32 %v771, %v775
    %779 = vrot.lane.b32.xlu0 %v773, 64
    %v780 = vpop.permute.xlu0 %779
    %v782 = vmul.f32 %v771, %v780
    %784 = vrot.lane.b32.xlu0 %v782, 32
    %v785 = vpop.permute.xlu0 %784
    %v787 = vadd.f32 %v777, %v785
    %v788 = vtanh.pop %v787
    %790 = vrot.lane.b32.xlu0 %v788, 64
    %v791 = vpop.permute.xlu0 %790
    %v793 = vmul.f32 %v771, %v791
    %v794 = vpack.c.bf16 %v793, %v793
    %796 = vrot.lane.b32.xlu0 %v794, 32
    %v797 = vpop.permute.xlu0 %796
    %v799 = vsel %vm197, %v797, 0
    %801 = vmatprep.subr.bf16.mxu0 0
    %802 = vmatpush1.bf16.msra.mxu0 %v397
    %803 = vmatprep.subr.bf16.mxu0 0
    %804 = vmatpush1.bf16.msra.mxu0 %v398
    %805 = vmatprep.subr.bf16.mxu0 0
    %806 = vmatpush1.bf16.msra.mxu0 0
    %807 = vmatprep.subr.bf16.mxu0 0
    %808 = vmatpush1.bf16.msra.mxu0 0
    %809 = vmatprep.subr.bf16.mxu0 0
    %810 = vmatpush1.bf16.msra.mxu0 0
    %811 = vmatprep.subr.bf16.mxu0 0
    %812 = vmatpush1.bf16.msra.mxu0 0
    %813 = vmatprep.subr.bf16.mxu0 0
    %814 = vmatpush1.bf16.msra.mxu0 0
    %815 = vmatprep.subr.bf16.mxu0 0
    %816 = vmatpush1.bf16.msra.mxu0 0
    %817 = vmatprep.subr.bf16.mxu0 0
    %818 = vmatpush1.bf16.msra.mxu0 0
    %819 = vmatprep.subr.bf16.mxu0 0
    %820 = vmatpush1.bf16.msra.mxu0 0
    %821 = vmatprep.subr.bf16.mxu0 0
    %822 = vmatpush1.bf16.msra.mxu0 0
    %823 = vmatprep.subr.bf16.mxu0 0
    %824 = vmatpush1.bf16.msra.mxu0 0
    %825 = vmatprep.subr.bf16.mxu0 0
    %826 = vmatpush1.bf16.msra.mxu0 0
    %827 = vmatprep.subr.bf16.mxu0 0
    %828 = vmatpush1.bf16.msra.mxu0 0
    %829 = vmatprep.subr.bf16.mxu0 0
    %830 = vmatpush1.bf16.msra.mxu0 0
    %831 = vmatprep.subr.bf16.mxu0 0
    %832 = vmatpush1.bf16.msra.mxu0 0
    %833 = vmatprep.mubr.bf16.mxu0 0
    %834 = vmatmul.mubr.bf16.gmra.mrb[0].mxu0 %v799
    %v835 = vpop.f32.mrb[0].mxu0
    %v836 = vadd.f32 %v761, %v835
    %v837 = vpop.f32.mrb[0].mxu0
    %v838 = vpop.f32.mrb[0].mxu0
    %v839 = vpop.f32.mrb[0].mxu0
    %840 = vdwg.mxu0
    %v841 = vadd.f32 %v836, %v521
    %v842 = vxor.u32 %v841, 2147483648
    %v843 = vmul.f32 %v842, 1.442695
    %v844 = vpow.pop %v843
    %v845 = vadd.f32 %v844, 1.0
    %v846 = vrcp.pop %v845
    %v847 = vmul.f32 1.0, %v846
    %v848 = vmul.f32 %v847, 2.0
    %v849 = vsub.f32 %v848, 1.0
    %v850 = vmul.f32 %v847, %v701
    %852 = vrot.lane.b32.xlu0 %v849, 64
    %v853 = vpop.permute.xlu0 %852
    %v855 = vmul.f32 %v847, %v853
    %857 = vrot.lane.b32.xlu0 %v855, 32
    %v858 = vpop.permute.xlu0 %857
    %v860 = vadd.f32 %v850, %v858
    %v861 = vtanh.pop %v860
    %863 = vrot.lane.b32.xlu0 %v861, 64
    %v864 = vpop.permute.xlu0 %863
    %v866 = vmul.f32 %v847, %v864
    %868 = vrot.lane.b32.xlu0 %v793, 32
    %v869 = vpop.permute.xlu0 %868
    %872 = vrot.lane.b32.xlu0 %v866, 64
    %v873 = vpop.permute.xlu0 %872
    %v875 = vsel %vm197, %v869, %v873
    %v876 = vpack.c.bf16 %v875, %v875
    %v878 = vsel %vm400, %v876, 0
    %880 = vmatprep.subr.bf16.mxu0 %v390
    %881 = vmatpush1.bf16.msra.mxu0 %v389
    %882 = vmatprep.subr.bf16.mxu0 %v392
    %883 = vmatpush1.bf16.msra.mxu0 %v391
    %884 = vmatprep.subr.bf16.mxu0 %v394
    %885 = vmatpush1.bf16.msra.mxu0 %v393
    %886 = vmatprep.subr.bf16.mxu0 %v396
    %887 = vmatpush1.bf16.msra.mxu0 %v395
    %888 = vmatprep.subr.bf16.mxu0 0
    %889 = vmatpush1.bf16.msra.mxu0 0
    %890 = vmatprep.subr.bf16.mxu0 0
    %891 = vmatpush1.bf16.msra.mxu0 0
    %892 = vmatprep.subr.bf16.mxu0 0
    %893 = vmatpush1.bf16.msra.mxu0 0
    %894 = vmatprep.subr.bf16.mxu0 0
    %895 = vmatpush1.bf16.msra.mxu0 0
    %896 = vmatprep.subr.bf16.mxu0 0
    %897 = vmatpush1.bf16.msra.mxu0 0
    %898 = vmatprep.subr.bf16.mxu0 0
    %899 = vmatpush1.bf16.msra.mxu0 0
    %900 = vmatprep.subr.bf16.mxu0 0
    %901 = vmatpush1.bf16.msra.mxu0 0
    %902 = vmatprep.subr.bf16.mxu0 0
    %903 = vmatpush1.bf16.msra.mxu0 0
    %904 = vmatprep.subr.bf16.mxu0 0
    %905 = vmatpush1.bf16.msra.mxu0 0
    %906 = vmatprep.subr.bf16.mxu0 0
    %907 = vmatpush1.bf16.msra.mxu0 0
    %908 = vmatprep.subr.bf16.mxu0 0
    %909 = vmatpush1.bf16.msra.mxu0 0
    %910 = vmatprep.subr.bf16.mxu0 0
    %911 = vmatpush1.bf16.msra.mxu0 0
    %912 = vmatprep.mubr.bf16.mxu0 0
    %913 = vmatmul.mubr.bf16.gmra.mrb[0].mxu0 %v878
    %v914 = vpop.f32.mrb[0].mxu0
    %v915 = vadd.f32 0.0, %v914
    %v916 = vpop.f32.mrb[0].mxu0
    %v917 = vadd.f32 0.0, %v916
    %v918 = vpop.f32.mrb[0].mxu0
    %v919 = vpop.f32.mrb[0].mxu0
    %920 = vdwg.mxu0
    %v922 = vrot.slane %v915, 4
    %v924 = vadd.f32 %v376, %v922
    %v925 = vxor.u32 %v924, 2147483648
    %v926 = vmul.f32 %v925, 1.442695
    %v927 = vpow.pop %v926
    %v928 = vadd.f32 %v927, 1.0
    %v929 = vrcp.pop %v928
    %v930 = vmul.f32 1.0, %v929
    %v931 = vmul.f32 %v930, 2.0
    %v932 = vsub.f32 %v931, 1.0
    %v934 = vrot.slane %v787, 4
    %v936 = vmul.f32 %v930, %v934
    %938 = vrot.lane.b32.xlu0 %v932, 64
    %v939 = vpop.permute.xlu0 %938
    %v941 = vmul.f32 %v930, %v939
    %943 = vrot.lane.b32.xlu0 %v941, 32
    %v944 = vpop.permute.xlu0 %943
    %v946 = vadd.f32 %v936, %v944
    %v947 = vtanh.pop %v946
    %949 = vrot.lane.b32.xlu0 %v947, 64
    %v950 = vpop.permute.xlu0 %949
    %v952 = vmul.f32 %v930, %v950
    %v953 = vpack.c.bf16 %v952, %v952
    %v955 = vrot.slane %v953, 2
    %956 = vrot.lane.b32.xlu0 %v955, 32
    %v957 = vpop.permute.xlu0 %956
    %v959 = vsel %vm197, %v957, 0
    %961 = vmatprep.subr.bf16.mxu0 0
    %962 = vmatpush1.bf16.msra.mxu0 %v397
    %963 = vmatprep.subr.bf16.mxu0 0
    %964 = vmatpush1.bf16.msra.mxu0 %v398
    %965 = vmatprep.subr.bf16.mxu0 0
    %966 = vmatpush1.bf16.msra.mxu0 0
    %967 = vmatprep.subr.bf16.mxu0 0
    %968 = vmatpush1.bf16.msra.mxu0 0
    %969 = vmatprep.subr.bf16.mxu0 0
    %970 = vmatpush1.bf16.msra.mxu0 0
    %971 = vmatprep.subr.bf16.mxu0 0
    %972 = vmatpush1.bf16.msra.mxu0 0
    %973 = vmatprep.subr.bf16.mxu0 0
    %974 = vmatpush1.bf16.msra.mxu0 0
    %975 = vmatprep.subr.bf16.mxu0 0
    %976 = vmatpush1.bf16.msra.mxu0 0
    %977 = vmatprep.subr.bf16.mxu0 0
    %978 = vmatpush1.bf16.msra.mxu0 0
    %979 = vmatprep.subr.bf16.mxu0 0
    %980 = vmatpush1.bf16.msra.mxu0 0
    %981 = vmatprep.subr.bf16.mxu0 0
    %982 = vmatpush1.bf16.msra.mxu0 0
    %983 = vmatprep.subr.bf16.mxu0 0
    %984 = vmatpush1.bf16.msra.mxu0 0
    %985 = vmatprep.subr.bf16.mxu0 0
    %986 = vmatpush1.bf16.msra.mxu0 0
    %987 = vmatprep.subr.bf16.mxu0 0
    %988 = vmatpush1.bf16.msra.mxu0 0
    %989 = vmatprep.subr.bf16.mxu0 0
    %990 = vmatpush1.bf16.msra.mxu0 0
    %991 = vmatprep.subr.bf16.mxu0 0
    %992 = vmatpush1.bf16.msra.mxu0 0
    %993 = vmatprep.mubr.bf16.mxu0 0
    %994 = vmatmul.mubr.bf16.gmra.mrb[0].mxu0 %v959
    %v995 = vpop.f32.mrb[0].mxu0
    %v996 = vadd.f32 %v917, %v995
    %v997 = vpop.f32.mrb[0].mxu0
    %v998 = vpop.f32.mrb[0].mxu0
    %v999 = vpop.f32.mrb[0].mxu0
    %1000 = vdwg.mxu0
    %v1001 = vadd.f32 %v996, %v521
    %v1002 = vxor.u32 %v1001, 2147483648
    %v1003 = vmul.f32 %v1002, 1.442695
    %v1004 = vpow.pop %v1003
    %v1005 = vadd.f32 %v1004, 1.0
    %v1006 = vrcp.pop %v1005
    %v1007 = vmul.f32 1.0, %v1006
    %v1008 = vmul.f32 %v1007, 2.0
    %v1009 = vsub.f32 %v1008, 1.0
    %v1010 = vmul.f32 %v1007, %v860
    %1012 = vrot.lane.b32.xlu0 %v1009, 64
    %v1013 = vpop.permute.xlu0 %1012
    %v1015 = vmul.f32 %v1007, %v1013
    %1017 = vrot.lane.b32.xlu0 %v1015, 32
    %v1018 = vpop.permute.xlu0 %1017
    %v1020 = vadd.f32 %v1010, %v1018
    %v1021 = vtanh.pop %v1020
    %1023 = vrot.lane.b32.xlu0 %v1021, 64
    %v1024 = vpop.permute.xlu0 %1023
    %v1026 = vmul.f32 %v1007, %v1024
    %1028 = vrot.lane.b32.xlu0 %v952, 32
    %v1029 = vpop.permute.xlu0 %1028
    %v1032 = vrot.slane %v1026, 4
    %1033 = vrot.lane.b32.xlu0 %v1032, 64
    %v1034 = vpop.permute.xlu0 %1033
    %v1036 = vsel %vm197, %v1029, %v1034
    %v1037 = vpack.c.bf16 %v1036, %v1036
    %v1039 = vrot.slane %v1037, 2
    %v1041 = vsel %vm400, %v1039, 0
    %1043 = vmatprep.subr.bf16.mxu0 %v390
    %1044 = vmatpush1.bf16.msra.mxu0 %v389
    %1045 = vmatprep.subr.bf16.mxu0 %v392
    %1046 = vmatpush1.bf16.msra.mxu0 %v391
    %1047 = vmatprep.subr.bf16.mxu0 %v394
    %1048 = vmatpush1.bf16.msra.mxu0 %v393
    %1049 = vmatprep.subr.bf16.mxu0 %v396
    %1050 = vmatpush1.bf16.msra.mxu0 %v395
    %1051 = vmatprep.subr.bf16.mxu0 0
    %1052 = vmatpush1.bf16.msra.mxu0 0
    %1053 = vmatprep.subr.bf16.mxu0 0
    %1054 = vmatpush1.bf16.msra.mxu0 0
    %1055 = vmatprep.subr.bf16.mxu0 0
    %1056 = vmatpush1.bf16.msra.mxu0 0
    %1057 = vmatprep.subr.bf16.mxu0 0
    %1058 = vmatpush1.bf16.msra.mxu0 0
    %1059 = vmatprep.subr.bf16.mxu0 0
    %1060 = vmatpush1.bf16.msra.mxu0 0
    %1061 = vmatprep.subr.bf16.mxu0 0
    %1062 = vmatpush1.bf16.msra.mxu0 0
    %1063 = vmatprep.subr.bf16.mxu0 0
    %1064 = vmatpush1.bf16.msra.mxu0 0
    %1065 = vmatprep.subr.bf16.mxu0 0
    %1066 = vmatpush1.bf16.msra.mxu0 0
    %1067 = vmatprep.subr.bf16.mxu0 0
    %1068 = vmatpush1.bf16.msra.mxu0 0
    %1069 = vmatprep.subr.bf16.mxu0 0
    %1070 = vmatpush1.bf16.msra.mxu0 0
    %1071 = vmatprep.subr.bf16.mxu0 0
    %1072 = vmatpush1.bf16.msra.mxu0 0
    %1073 = vmatprep.subr.bf16.mxu0 0
    %1074 = vmatpush1.bf16.msra.mxu0 0
    %1075 = vmatprep.mubr.bf16.mxu0 0
    %1076 = vmatmul.mubr.bf16.gmra.mrb[0].mxu0 %v1041
    %v1077 = vpop.f32.mrb[0].mxu0
    %v1078 = vadd.f32 0.0, %v1077
    %v1079 = vpop.f32.mrb[0].mxu0
    %v1080 = vadd.f32 0.0, %v1079
    %v1081 = vpop.f32.mrb[0].mxu0
    %v1082 = vpop.f32.mrb[0].mxu0
    %1083 = vdwg.mxu0
    %v1084 = vadd.f32 %v381, %v1078
    %v1085 = vxor.u32 %v1084, 2147483648
    %v1086 = vmul.f32 %v1085, 1.442695
    %v1087 = vpow.pop %v1086
    %v1088 = vadd.f32 %v1087, 1.0
    %v1089 = vrcp.pop %v1088
    %v1090 = vmul.f32 1.0, %v1089
    %v1091 = vmul.f32 %v1090, 2.0
    %v1092 = vsub.f32 %v1091, 1.0
    %v1094 = vrot.slane %v946, 4
    %v1096 = vmul.f32 %v1090, %v1094
    %1098 = vrot.lane.b32.xlu0 %v1092, 64
    %v1099 = vpop.permute.xlu0 %1098
    %v1101 = vmul.f32 %v1090, %v1099
    %1103 = vrot.lane.b32.xlu0 %v1101, 32
    %v1104 = vpop.permute.xlu0 %1103
    %v1106 = vadd.f32 %v1096, %v1104
    %v1107 = vtanh.pop %v1106
    %1109 = vrot.lane.b32.xlu0 %v1107, 64
    %v1110 = vpop.permute.xlu0 %1109
    %v1112 = vmul.f32 %v1090, %v1110
    %v1113 = vpack.c.bf16 %v1112, %v1112
    %1115 = vrot.lane.b32.xlu0 %v1113, 32
    %v1116 = vpop.permute.xlu0 %1115
    %v1118 = vsel %vm197, %v1116, 0
    %1120 = vmatprep.subr.bf16.mxu0 0
    %1121 = vmatpush1.bf16.msra.mxu0 %v397
    %1122 = vmatprep.subr.bf16.mxu0 0
    %1123 = vmatpush1.bf16.msra.mxu0 %v398
    %1124 = vmatprep.subr.bf16.mxu0 0
    %1125 = vmatpush1.bf16.msra.mxu0 0
    %1126 = vmatprep.subr.bf16.mxu0 0
    %1127 = vmatpush1.bf16.msra.mxu0 0
    %1128 = vmatprep.subr.bf16.mxu0 0
    %1129 = vmatpush1.bf16.msra.mxu0 0
    %1130 = vmatprep.subr.bf16.mxu0 0
    %1131 = vmatpush1.bf16.msra.mxu0 0
    %1132 = vmatprep.subr.bf16.mxu0 0
    %1133 = vmatpush1.bf16.msra.mxu0 0
    %1134 = vmatprep.subr.bf16.mxu0 0
    %1135 = vmatpush1.bf16.msra.mxu0 0
    %1136 = vmatprep.subr.bf16.mxu0 0
    %1137 = vmatpush1.bf16.msra.mxu0 0
    %1138 = vmatprep.subr.bf16.mxu0 0
    %1139 = vmatpush1.bf16.msra.mxu0 0
    %1140 = vmatprep.subr.bf16.mxu0 0
    %1141 = vmatpush1.bf16.msra.mxu0 0
    %1142 = vmatprep.subr.bf16.mxu0 0
    %1143 = vmatpush1.bf16.msra.mxu0 0
    %1144 = vmatprep.subr.bf16.mxu0 0
    %1145 = vmatpush1.bf16.msra.mxu0 0
    %1146 = vmatprep.subr.bf16.mxu0 0
    %1147 = vmatpush1.bf16.msra.mxu0 0
    %1148 = vmatprep.subr.bf16.mxu0 0
    %1149 = vmatpush1.bf16.msra.mxu0 0
    %1150 = vmatprep.subr.bf16.mxu0 0
    %1151 = vmatpush1.bf16.msra.mxu0 0
    %1152 = vmatprep.mubr.bf16.mxu0 0
    %1153 = vmatmul.mubr.bf16.gmra.mrb[0].mxu0 %v1118
    %v1154 = vpop.f32.mrb[0].mxu0
    %v1155 = vadd.f32 %v1080, %v1154
    %v1156 = vpop.f32.mrb[0].mxu0
    %v1157 = vpop.f32.mrb[0].mxu0
    %v1158 = vpop.f32.mrb[0].mxu0
    %1159 = vdwg.mxu0
    %v1160 = vadd.f32 %v1155, %v521
    %v1161 = vxor.u32 %v1160, 2147483648
    %v1162 = vmul.f32 %v1161, 1.442695
    %v1163 = vpow.pop %v1162
    %v1164 = vadd.f32 %v1163, 1.0
    %v1165 = vrcp.pop %v1164
    %v1166 = vmul.f32 1.0, %v1165
    %v1167 = vmul.f32 %v1166, 2.0
    %v1168 = vsub.f32 %v1167, 1.0
    %v1169 = vmul.f32 %v1166, %v1020
    %1171 = vrot.lane.b32.xlu0 %v1168, 64
    %v1172 = vpop.permute.xlu0 %1171
    %v1174 = vmul.f32 %v1166, %v1172
    %1176 = vrot.lane.b32.xlu0 %v1174, 32
    %v1177 = vpop.permute.xlu0 %1176
    %v1179 = vadd.f32 %v1169, %v1177
    %v1180 = vtanh.pop %v1179
    %1182 = vrot.lane.b32.xlu0 %v1180, 64
    %v1183 = vpop.permute.xlu0 %1182
    %v1185 = vmul.f32 %v1166, %v1183
    %1187 = vrot.lane.b32.xlu0 %v1112, 32
    %v1188 = vpop.permute.xlu0 %1187
    %1191 = vrot.lane.b32.xlu0 %v1185, 64
    %v1192 = vpop.permute.xlu0 %1191
    %v1194 = vsel %vm197, %v1188, %v1192
    %v1195 = vpack.c.bf16 %v1194, %v1194
    %v1197 = vsel %vm400, %v1195, 0
    %1199 = vmatprep.subr.bf16.mxu0 %v390
    %1200 = vmatpush1.bf16.msra.mxu0 %v389
    %1201 = vmatprep.subr.bf16.mxu0 %v392
    %1202 = vmatpush1.bf16.msra.mxu0 %v391
    %1203 = vmatprep.subr.bf16.mxu0 %v394
    %1204 = vmatpush1.bf16.msra.mxu0 %v393
    %1205 = vmatprep.subr.bf16.mxu0 %v396
    %1206 = vmatpush1.bf16.msra.mxu0 %v395
    %1207 = vmatprep.subr.bf16.mxu0 0
    %1208 = vmatpush1.bf16.msra.mxu0 0
    %1209 = vmatprep.subr.bf16.mxu0 0
    %1210 = vmatpush1.bf16.msra.mxu0 0
    %1211 = vmatprep.subr.bf16.mxu0 0
    %1212 = vmatpush1.bf16.msra.mxu0 0
    %1213 = vmatprep.subr.bf16.mxu0 0
    %1214 = vmatpush1.bf16.msra.mxu0 0
    %1215 = vmatprep.subr.bf16.mxu0 0
    %1216 = vmatpush1.bf16.msra.mxu0 0
    %1217 = vmatprep.subr.bf16.mxu0 0
    %1218 = vmatpush1.bf16.msra.mxu0 0
    %1219 = vmatprep.subr.bf16.mxu0 0
    %1220 = vmatpush1.bf16.msra.mxu0 0
    %1221 = vmatprep.subr.bf16.mxu0 0
    %1222 = vmatpush1.bf16.msra.mxu0 0
    %1223 = vmatprep.subr.bf16.mxu0 0
    %1224 = vmatpush1.bf16.msra.mxu0 0
    %1225 = vmatprep.subr.bf16.mxu0 0
    %1226 = vmatpush1.bf16.msra.mxu0 0
    %1227 = vmatprep.subr.bf16.mxu0 0
    %1228 = vmatpush1.bf16.msra.mxu0 0
    %1229 = vmatprep.subr.bf16.mxu0 0
    %1230 = vmatpush1.bf16.msra.mxu0 0
    %1231 = vmatprep.mubr.bf16.mxu0 0
    %1232 = vmatmul.mubr.bf16.gmra.mrb[0].mxu0 %v1197
    %v1233 = vpop.f32.mrb[0].mxu0
    %v1234 = vadd.f32 0.0, %v1233
    %v1235 = vpop.f32.mrb[0].mxu0
    %v1236 = vadd.f32 0.0, %v1235
    %v1237 = vpop.f32.mrb[0].mxu0
    %v1238 = vpop.f32.mrb[0].mxu0
    %1239 = vdwg.mxu0
    %v1241 = vrot.slane %v1234, 4
    %v1243 = vadd.f32 %v381, %v1241
    %v1244 = vxor.u32 %v1243, 2147483648
    %v1245 = vmul.f32 %v1244, 1.442695
    %v1246 = vpow.pop %v1245
    %v1247 = vadd.f32 %v1246, 1.0
    %v1248 = vrcp.pop %v1247
    %v1249 = vmul.f32 1.0, %v1248
    %v1250 = vmul.f32 %v1249, 2.0
    %v1251 = vsub.f32 %v1250, 1.0
    %v1253 = vrot.slane %v1106, 4
    %v1255 = vmul.f32 %v1249, %v1253
    %1257 = vrot.lane.b32.xlu0 %v1251, 64
    %v1258 = vpop.permute.xlu0 %1257
    %v1260 = vmul.f32 %v1249, %v1258
    %1262 = vrot.lane.b32.xlu0 %v1260, 32
    %v1263 = vpop.permute.xlu0 %1262
    %v1265 = vadd.f32 %v1255, %v1263
    %v1266 = vtanh.pop %v1265
    %1268 = vrot.lane.b32.xlu0 %v1266, 64
    %v1269 = vpop.permute.xlu0 %1268
    %v1271 = vmul.f32 %v1249, %v1269
    %v1272 = vpack.c.bf16 %v1271, %v1271
    %v1274 = vrot.slane %v1272, 2
    %1275 = vrot.lane.b32.xlu0 %v1274, 32
    %v1276 = vpop.permute.xlu0 %1275
    %v1278 = vsel %vm197, %v1276, 0
    %1280 = vmatprep.subr.bf16.mxu0 0
    %1281 = vmatpush1.bf16.msra.mxu0 %v397
    %1282 = vmatprep.subr.bf16.mxu0 0
    %1283 = vmatpush1.bf16.msra.mxu0 %v398
    %1284 = vmatprep.subr.bf16.mxu0 0
    %1285 = vmatpush1.bf16.msra.mxu0 0
    %1286 = vmatprep.subr.bf16.mxu0 0
    %1287 = vmatpush1.bf16.msra.mxu0 0
    %1288 = vmatprep.subr.bf16.mxu0 0
    %1289 = vmatpush1.bf16.msra.mxu0 0
    %1290 = vmatprep.subr.bf16.mxu0 0
    %1291 = vmatpush1.bf16.msra.mxu0 0
    %1292 = vmatprep.subr.bf16.mxu0 0
    %1293 = vmatpush1.bf16.msra.mxu0 0
    %1294 = vmatprep.subr.bf16.mxu0 0
    %1295 = vmatpush1.bf16.msra.mxu0 0
    %1296 = vmatprep.subr.bf16.mxu0 0
    %1297 = vmatpush1.bf16.msra.mxu0 0
    %1298 = vmatprep.subr.bf16.mxu0 0
    %1299 = vmatpush1.bf16.msra.mxu0 0
    %1300 = vmatprep.subr.bf16.mxu0 0
    %1301 = vmatpush1.bf16.msra.mxu0 0
    %1302 = vmatprep.subr.bf16.mxu0 0
    %1303 = vmatpush1.bf16.msra.mxu0 0
    %1304 = vmatprep.subr.bf16.mxu0 0
    %1305 = vmatpush1.bf16.msra.mxu0 0
    %1306 = vmatprep.subr.bf16.mxu0 0
    %1307 = vmatpush1.bf16.msra.mxu0 0
    %1308 = vmatprep.subr.bf16.mxu0 0
    %1309 = vmatpush1.bf16.msra.mxu0 0
    %1310 = vmatprep.subr.bf16.mxu0 0
    %1311 = vmatpush1.bf16.msra.mxu0 0
    %1312 = vmatprep.mubr.bf16.mxu0 0
    %1313 = vmatmul.mubr.bf16.gmra.mrb[0].mxu0 %v1278
    %v1314 = vpop.f32.mrb[0].mxu0
    %v1315 = vadd.f32 %v1236, %v1314
    %v1316 = vpop.f32.mrb[0].mxu0
    %v1317 = vpop.f32.mrb[0].mxu0
    %v1318 = vpop.f32.mrb[0].mxu0
    %1319 = vdwg.mxu0
    %v1320 = vadd.f32 %v1315, %v521
    %v1321 = vxor.u32 %v1320, 2147483648
    %v1322 = vmul.f32 %v1321, 1.442695
    %v1323 = vpow.pop %v1322
    %v1324 = vadd.f32 %v1323, 1.0
    %v1325 = vrcp.pop %v1324
    %v1326 = vmul.f32 1.0, %v1325
    %v1327 = vmul.f32 %v1326, 2.0
    %v1328 = vsub.f32 %v1327, 1.0
    %v1329 = vmul.f32 %v1326, %v1179
    %1331 = vrot.lane.b32.xlu0 %v1328, 64
    %v1332 = vpop.permute.xlu0 %1331
    %v1334 = vmul.f32 %v1326, %v1332
    %1336 = vrot.lane.b32.xlu0 %v1334, 32
    %v1337 = vpop.permute.xlu0 %1336
    %v1339 = vadd.f32 %v1329, %v1337
    %v1340 = vtanh.pop %v1339
    %1342 = vrot.lane.b32.xlu0 %v1340, 64
    %v1343 = vpop.permute.xlu0 %1342
    %v1345 = vmul.f32 %v1326, %v1343
    %1347 = vrot.lane.b32.xlu0 %v1271, 32
    %v1348 = vpop.permute.xlu0 %1347
    %v1351 = vrot.slane %v1345, 4
    %1352 = vrot.lane.b32.xlu0 %v1351, 64
    %v1353 = vpop.permute.xlu0 %1352
    %v1355 = vsel %vm197, %v1348, %v1353
    %v1356 = vpack.c.bf16 %v1355, %v1355
    %v1358 = vrot.slane %v1356, 2
    %v1360 = vsel %vm400, %v1358, 0
    %1362 = vmatprep.subr.bf16.mxu0 %v390
    %1363 = vmatpush1.bf16.msra.mxu0 %v389
    %1364 = vmatprep.subr.bf16.mxu0 %v392
    %1365 = vmatpush1.bf16.msra.mxu0 %v391
    %1366 = vmatprep.subr.bf16.mxu0 %v394
    %1367 = vmatpush1.bf16.msra.mxu0 %v393
    %1368 = vmatprep.subr.bf16.mxu0 %v396
    %1369 = vmatpush1.bf16.msra.mxu0 %v395
    %1370 = vmatprep.subr.bf16.mxu0 0
    %1371 = vmatpush1.bf16.msra.mxu0 0
    %1372 = vmatprep.subr.bf16.mxu0 0
    %1373 = vmatpush1.bf16.msra.mxu0 0
    %1374 = vmatprep.subr.bf16.mxu0 0
    %1375 = vmatpush1.bf16.msra.mxu0 0
    %1376 = vmatprep.subr.bf16.mxu0 0
    %1377 = vmatpush1.bf16.msra.mxu0 0
    %1378 = vmatprep.subr.bf16.mxu0 0
    %1379 = vmatpush1.bf16.msra.mxu0 0
    %1380 = vmatprep.subr.bf16.mxu0 0
    %1381 = vmatpush1.bf16.msra.mxu0 0
    %1382 = vmatprep.subr.bf16.mxu0 0
    %1383 = vmatpush1.bf16.msra.mxu0 0
    %1384 = vmatprep.subr.bf16.mxu0 0
    %1385 = vmatpush1.bf16.msra.mxu0 0
    %1386 = vmatprep.subr.bf16.mxu0 0
    %1387 = vmatpush1.bf16.msra.mxu0 0
    %1388 = vmatprep.subr.bf16.mxu0 0
    %1389 = vmatpush1.bf16.msra.mxu0 0
    %1390 = vmatprep.subr.bf16.mxu0 0
    %1391 = vmatpush1.bf16.msra.mxu0 0
    %1392 = vmatprep.subr.bf16.mxu0 0
    %1393 = vmatpush1.bf16.msra.mxu0 0
    %1394 = vmatprep.mubr.bf16.mxu0 0
    %1395 = vmatmul.mubr.bf16.gmra.mrb[0].mxu0 %v1360
    %v1396 = vpop.f32.mrb[0].mxu0
    %v1397 = vadd.f32 0.0, %v1396
    %v1398 = vpop.f32.mrb[0].mxu0
    %v1399 = vadd.f32 0.0, %v1398
    %v1400 = vpop.f32.mrb[0].mxu0
    %v1401 = vpop.f32.mrb[0].mxu0
    %1402 = vdwg.mxu0
    %v1403 = vadd.f32 %v386, %v1397
    %v1404 = vxor.u32 %v1403, 2147483648
    %v1405 = vmul.f32 %v1404, 1.442695
    %v1406 = vpow.pop %v1405
    %v1407 = vadd.f32 %v1406, 1.0
    %v1408 = vrcp.pop %v1407
    %v1409 = vmul.f32 1.0, %v1408
    %v1410 = vmul.f32 %v1409, 2.0
    %v1411 = vsub.f32 %v1410, 1.0
    %v1413 = vrot.slane %v1265, 4
    %v1415 = vmul.f32 %v1409, %v1413
    %1417 = vrot.lane.b32.xlu0 %v1411, 64
    %v1418 = vpop.permute.xlu0 %1417
    %v1420 = vmul.f32 %v1409, %v1418
    %1422 = vrot.lane.b32.xlu0 %v1420, 32
    %v1423 = vpop.permute.xlu0 %1422
    %v1425 = vadd.f32 %v1415, %v1423
    %v1426 = vtanh.pop %v1425
    %1428 = vrot.lane.b32.xlu0 %v1426, 64
    %v1429 = vpop.permute.xlu0 %1428
    %v1431 = vmul.f32 %v1409, %v1429
    %v1432 = vpack.c.bf16 %v1431, %v1431
    %1434 = vrot.lane.b32.xlu0 %v1432, 32
    %v1435 = vpop.permute.xlu0 %1434
    %v1437 = vsel %vm197, %v1435, 0
    %1439 = vmatprep.subr.bf16.mxu0 0
    %1440 = vmatpush1.bf16.msra.mxu0 %v397
    %1441 = vmatprep.subr.bf16.mxu0 0
    %1442 = vmatpush1.bf16.msra.mxu0 %v398
    %1443 = vmatprep.subr.bf16.mxu0 0
    %1444 = vmatpush1.bf16.msra.mxu0 0
    %1445 = vmatprep.subr.bf16.mxu0 0
    %1446 = vmatpush1.bf16.msra.mxu0 0
    %1447 = vmatprep.subr.bf16.mxu0 0
    %1448 = vmatpush1.bf16.msra.mxu0 0
    %1449 = vmatprep.subr.bf16.mxu0 0
    %1450 = vmatpush1.bf16.msra.mxu0 0
    %1451 = vmatprep.subr.bf16.mxu0 0
    %1452 = vmatpush1.bf16.msra.mxu0 0
    %1453 = vmatprep.subr.bf16.mxu0 0
    %1454 = vmatpush1.bf16.msra.mxu0 0
    %1455 = vmatprep.subr.bf16.mxu0 0
    %1456 = vmatpush1.bf16.msra.mxu0 0
    %1457 = vmatprep.subr.bf16.mxu0 0
    %1458 = vmatpush1.bf16.msra.mxu0 0
    %1459 = vmatprep.subr.bf16.mxu0 0
    %1460 = vmatpush1.bf16.msra.mxu0 0
    %1461 = vmatprep.subr.bf16.mxu0 0
    %1462 = vmatpush1.bf16.msra.mxu0 0
    %1463 = vmatprep.subr.bf16.mxu0 0
    %1464 = vmatpush1.bf16.msra.mxu0 0
    %1465 = vmatprep.subr.bf16.mxu0 0
    %1466 = vmatpush1.bf16.msra.mxu0 0
    %1467 = vmatprep.subr.bf16.mxu0 0
    %1468 = vmatpush1.bf16.msra.mxu0 0
    %1469 = vmatprep.subr.bf16.mxu0 0
    %1470 = vmatpush1.bf16.msra.mxu0 0
    %1471 = vmatprep.mubr.bf16.mxu0 0
    %1472 = vmatmul.mubr.bf16.gmra.mrb[0].mxu0 %v1437
    %v1473 = vpop.f32.mrb[0].mxu0
    %v1474 = vadd.f32 %v1399, %v1473
    %v1475 = vpop.f32.mrb[0].mxu0
    %v1476 = vpop.f32.mrb[0].mxu0
    %v1477 = vpop.f32.mrb[0].mxu0
    %1478 = vdwg.mxu0
    %v1479 = vadd.f32 %v1474, %v521
    %v1480 = vxor.u32 %v1479, 2147483648
    %v1481 = vmul.f32 %v1480, 1.442695
    %v1482 = vpow.pop %v1481
    %v1483 = vadd.f32 %v1482, 1.0
    %v1484 = vrcp.pop %v1483
    %v1485 = vmul.f32 1.0, %v1484
    %v1486 = vmul.f32 %v1485, 2.0
    %v1487 = vsub.f32 %v1486, 1.0
    %v1488 = vmul.f32 %v1485, %v1339
    %1490 = vrot.lane.b32.xlu0 %v1487, 64
    %v1491 = vpop.permute.xlu0 %1490
    %v1493 = vmul.f32 %v1485, %v1491
    %1495 = vrot.lane.b32.xlu0 %v1493, 32
    %v1496 = vpop.permute.xlu0 %1495
    %v1498 = vadd.f32 %v1488, %v1496
    %v1499 = vtanh.pop %v1498
    %1501 = vrot.lane.b32.xlu0 %v1499, 64
    %v1502 = vpop.permute.xlu0 %1501
    %v1504 = vmul.f32 %v1485, %v1502
    %1506 = vrot.lane.b32.xlu0 %v1431, 32
    %v1507 = vpop.permute.xlu0 %1506
    %1510 = vrot.lane.b32.xlu0 %v1504, 64
    %v1511 = vpop.permute.xlu0 %1510
    %v1513 = vsel %vm197, %v1507, %v1511
    %v1514 = vpack.c.bf16 %v1513, %v1513
    %v1516 = vsel %vm400, %v1514, 0
    %1518 = vmatprep.subr.bf16.mxu0 %v390
    %1519 = vmatpush1.bf16.msra.mxu0 %v389
    %1520 = vmatprep.subr.bf16.mxu0 %v392
    %1521 = vmatpush1.bf16.msra.mxu0 %v391
    %1522 = vmatprep.subr.bf16.mxu0 %v394
    %1523 = vmatpush1.bf16.msra.mxu0 %v393
    %1524 = vmatprep.subr.bf16.mxu0 %v396
    %1525 = vmatpush1.bf16.msra.mxu0 %v395
    %1526 = vmatprep.subr.bf16.mxu0 0
    %1527 = vmatpush1.bf16.msra.mxu0 0
    %1528 = vmatprep.subr.bf16.mxu0 0
    %1529 = vmatpush1.bf16.msra.mxu0 0
    %1530 = vmatprep.subr.bf16.mxu0 0
    %1531 = vmatpush1.bf16.msra.mxu0 0
    %1532 = vmatprep.subr.bf16.mxu0 0
    %1533 = vmatpush1.bf16.msra.mxu0 0
    %1534 = vmatprep.subr.bf16.mxu0 0
    %1535 = vmatpush1.bf16.msra.mxu0 0
    %1536 = vmatprep.subr.bf16.mxu0 0
    %1537 = vmatpush1.bf16.msra.mxu0 0
    %1538 = vmatprep.subr.bf16.mxu0 0
    %1539 = vmatpush1.bf16.msra.mxu0 0
    %1540 = vmatprep.subr.bf16.mxu0 0
    %1541 = vmatpush1.bf16.msra.mxu0 0
    %1542 = vmatprep.subr.bf16.mxu0 0
    %1543 = vmatpush1.bf16.msra.mxu0 0
    %1544 = vmatprep.subr.bf16.mxu0 0
    %1545 = vmatpush1.bf16.msra.mxu0 0
    %1546 = vmatprep.subr.bf16.mxu0 0
    %1547 = vmatpush1.bf16.msra.mxu0 0
    %1548 = vmatprep.subr.bf16.mxu0 0
    %1549 = vmatpush1.bf16.msra.mxu0 0
    %1550 = vmatprep.mubr.bf16.mxu0 0
    %1551 = vmatmul.mubr.bf16.gmra.mrb[0].mxu0 %v1516
    %v1552 = vpop.f32.mrb[0].mxu0
    %v1553 = vadd.f32 0.0, %v1552
    %v1554 = vpop.f32.mrb[0].mxu0
    %v1555 = vadd.f32 0.0, %v1554
    %v1556 = vpop.f32.mrb[0].mxu0
    %v1557 = vpop.f32.mrb[0].mxu0
    %1558 = vdwg.mxu0
    %v1560 = vrot.slane %v1553, 4
    %v1562 = vadd.f32 %v386, %v1560
    %v1563 = vxor.u32 %v1562, 2147483648
    %v1564 = vmul.f32 %v1563, 1.442695
    %v1565 = vpow.pop %v1564
    %v1566 = vadd.f32 %v1565, 1.0
    %v1567 = vrcp.pop %v1566
    %v1568 = vmul.f32 1.0, %v1567
    %v1569 = vmul.f32 %v1568, 2.0
    %v1570 = vsub.f32 %v1569, 1.0
    %v1572 = vrot.slane %v1425, 4
    %v1574 = vmul.f32 %v1568, %v1572
    %1576 = vrot.lane.b32.xlu0 %v1570, 64
    %v1577 = vpop.permute.xlu0 %1576
    %v1579 = vmul.f32 %v1568, %v1577
    %1581 = vrot.lane.b32.xlu0 %v1579, 32
    %v1582 = vpop.permute.xlu0 %1581
    %v1584 = vadd.f32 %v1574, %v1582
    %v1585 = vtanh.pop %v1584
    %1587 = vrot.lane.b32.xlu0 %v1585, 64
    %v1588 = vpop.permute.xlu0 %1587
    %v1590 = vmul.f32 %v1568, %v1588
    %v1591 = vpack.c.bf16 %v1590, %v1590
    %v1593 = vrot.slane %v1591, 2
    %1594 = vrot.lane.b32.xlu0 %v1593, 32
    %v1595 = vpop.permute.xlu0 %1594
    %v1597 = vsel %vm197, %v1595, 0
    %1599 = vmatprep.subr.bf16.mxu0 0
    %1600 = vmatpush1.bf16.msra.mxu0 %v397
    %1601 = vmatprep.subr.bf16.mxu0 0
    %1602 = vmatpush1.bf16.msra.mxu0 %v398
    %1603 = vmatprep.subr.bf16.mxu0 0
    %1604 = vmatpush1.bf16.msra.mxu0 0
    %1605 = vmatprep.subr.bf16.mxu0 0
    %1606 = vmatpush1.bf16.msra.mxu0 0
    %1607 = vmatprep.subr.bf16.mxu0 0
    %1608 = vmatpush1.bf16.msra.mxu0 0
    %1609 = vmatprep.subr.bf16.mxu0 0
    %1610 = vmatpush1.bf16.msra.mxu0 0
    %1611 = vmatprep.subr.bf16.mxu0 0
    %1612 = vmatpush1.bf16.msra.mxu0 0
    %1613 = vmatprep.subr.bf16.mxu0 0
    %1614 = vmatpush1.bf16.msra.mxu0 0
    %1615 = vmatprep.subr.bf16.mxu0 0
    %1616 = vmatpush1.bf16.msra.mxu0 0
    %1617 = vmatprep.subr.bf16.mxu0 0
    %1618 = vmatpush1.bf16.msra.mxu0 0
    %1619 = vmatprep.subr.bf16.mxu0 0
    %1620 = vmatpush1.bf16.msra.mxu0 0
    %1621 = vmatprep.subr.bf16.mxu0 0
    %1622 = vmatpush1.bf16.msra.mxu0 0
    %1623 = vmatprep.subr.bf16.mxu0 0
    %1624 = vmatpush1.bf16.msra.mxu0 0
    %1625 = vmatprep.subr.bf16.mxu0 0
    %1626 = vmatpush1.bf16.msra.mxu0 0
    %1627 = vmatprep.subr.bf16.mxu0 0
    %1628 = vmatpush1.bf16.msra.mxu0 0
    %1629 = vmatprep.subr.bf16.mxu0 0
    %1630 = vmatpush1.bf16.msra.mxu0 0
    %1631 = vmatprep.mubr.bf16.mxu0 0
    %1632 = vmatmul.mubr.bf16.gmra.mrb[0].mxu0 %v1597
    %v1633 = vpop.f32.mrb[0].mxu0
    %v1634 = vadd.f32 %v1555, %v1633
    %v1635 = vpop.f32.mrb[0].mxu0
    %v1636 = vpop.f32.mrb[0].mxu0
    %v1637 = vpop.f32.mrb[0].mxu0
    %1638 = vdwg.mxu0
    %v1639 = vadd.f32 %v1634, %v521
    %v1640 = vxor.u32 %v1639, 2147483648
    %v1641 = vmul.f32 %v1640, 1.442695
    %v1642 = vpow.pop %v1641
    %v1643 = vadd.f32 %v1642, 1.0
    %v1644 = vrcp.pop %v1643
    %v1645 = vmul.f32 1.0, %v1644
    %v1646 = vmul.f32 %v1645, 2.0
    %v1647 = vsub.f32 %v1646, 1.0
    %v1648 = vmul.f32 %v1645, %v1498
    %1650 = vrot.lane.b32.xlu0 %v1647, 64
    %v1651 = vpop.permute.xlu0 %1650
    %v1653 = vmul.f32 %v1645, %v1651
    %1655 = vrot.lane.b32.xlu0 %v1653, 32
    %v1656 = vpop.permute.xlu0 %1655
    %v1658 = vadd.f32 %v1648, %v1656
    %v1659 = vtanh.pop %v1658
    %1661 = vrot.lane.b32.xlu0 %v1659, 64
    %v1662 = vpop.permute.xlu0 %1661
    %v1664 = vmul.f32 %v1645, %v1662
    %v1665 = vld [vmem:[%s7] sm:$0xff]
    %v1666 = vld [vmem:[%s7 + $0x8] sm:$0x1]
    %v1667 = vld [vmem:[#allocation2] sm:$0xf]
    %vm1668 = vcmask 64512
    %v1670 = vsel %vm1668, %v1667, 0
    %1672 = vmatprep.subr.mxu0 0.0
    %1673 = vmatpush1.msra.mxu0 %v1665
    %1674 = vmatprep.subr.mxu0 0.0
    %1675 = vmatpush1.msra.mxu0 0.0
    %1676 = vmatprep.subr.mxu0 0.0
    %1677 = vmatpush1.msra.mxu0 0.0
    %1678 = vmatprep.subr.mxu0 0.0
    %1679 = vmatpush1.msra.mxu0 0.0
    %1680 = vmatprep.subr.mxu0 0.0
    %1681 = vmatpush1.msra.mxu0 0.0
    %1682 = vmatprep.subr.mxu0 0.0
    %1683 = vmatpush1.msra.mxu0 0.0
    %1684 = vmatprep.subr.mxu0 0.0
    %1685 = vmatpush1.msra.mxu0 0.0
    %1686 = vmatprep.subr.mxu0 0.0
    %1687 = vmatpush1.msra.mxu0 0.0
    %1688 = vmatprep.subr.mxu0 0.0
    %1689 = vmatpush1.msra.mxu0 0.0
    %1690 = vmatprep.subr.mxu0 0.0
    %1691 = vmatpush1.msra.mxu0 0.0
    %1692 = vmatprep.subr.mxu0 0.0
    %1693 = vmatpush1.msra.mxu0 0.0
    %1694 = vmatprep.subr.mxu0 0.0
    %1695 = vmatpush1.msra.mxu0 0.0
    %1696 = vmatprep.subr.mxu0 0.0
    %1697 = vmatpush1.msra.mxu0 0.0
    %1698 = vmatprep.subr.mxu0 0.0
    %1699 = vmatpush1.msra.mxu0 0.0
    %1700 = vmatprep.subr.mxu0 0.0
    %1701 = vmatpush1.msra.mxu0 0.0
    %1702 = vmatprep.subr.mxu0 0.0
    %1703 = vmatpush1.msra.mxu0 0.0
    %1704 = vmatprep.subr.mxu0 0.0
    %1705 = vmatpush1.msra.mxu0 0.0
    %1706 = vmatprep.subr.mxu0 0.0
    %1707 = vmatpush1.msra.mxu0 0.0
    %1708 = vmatprep.subr.mxu0 0.0
    %1709 = vmatpush1.msra.mxu0 0.0
    %1710 = vmatprep.subr.mxu0 0.0
    %1711 = vmatpush1.msra.mxu0 0.0
    %1712 = vmatprep.subr.mxu0 0.0
    %1713 = vmatpush1.msra.mxu0 0.0
    %1714 = vmatprep.subr.mxu0 0.0
    %1715 = vmatpush1.msra.mxu0 0.0
    %1716 = vmatprep.subr.mxu0 0.0
    %1717 = vmatpush1.msra.mxu0 0.0
    %1718 = vmatprep.subr.mxu0 0.0
    %1719 = vmatpush1.msra.mxu0 0.0
    %1720 = vmatprep.subr.mxu0 0.0
    %1721 = vmatpush1.msra.mxu0 0.0
    %1722 = vmatprep.subr.mxu0 0.0
    %1723 = vmatpush1.msra.mxu0 0.0
    %1724 = vmatprep.subr.mxu0 0.0
    %1725 = vmatpush1.msra.mxu0 0.0
    %1726 = vmatprep.subr.mxu0 0.0
    %1727 = vmatpush1.msra.mxu0 0.0
    %1728 = vmatprep.subr.mxu0 0.0
    %1729 = vmatpush1.msra.mxu0 0.0
    %1730 = vmatprep.subr.mxu0 0.0
    %1731 = vmatpush1.msra.mxu0 0.0
    %1732 = vmatprep.subr.mxu0 0.0
    %1733 = vmatpush1.msra.mxu0 0.0
    %1734 = vmatprep.subr.mxu0 0.0
    %1735 = vmatpush1.msra.mxu0 0.0
    %1736 = vmatprep.mubr.f32.mxu0 0.0
    %1737 = vmatmul.mubr.f32.gmra.mrb[0].mxu0 %v1670
    %v1738 = vpop.f32.mrb[0].mxu0
    %v1739 = vadd.f32 0.0, %v1738
    %v1740 = vpop.f32.mrb[0].mxu0
    %1741 = vdwg.mxu0
    %v1742 = vld [vmem:[%s6] sm:$0xff]
    %v1743 = vld [vmem:[%s6 + $0x8] sm:$0xff]
    %v1744 = vld [vmem:[%s6 + $0x10] sm:$0xff]
    %v1745 = vld [vmem:[%s6 + $0x18] sm:$0xff]
    %v1746 = vlaneseq
    %v1747 = vshrl.u32 %v1746, 7
    %v1748 = vsub.s32 0, %v1747
    %v1749 = vrot.slane %v1666, %v1748
    %1751 = vrot.lane.b32.xlu0 %v1664, 32
    %v1752 = vpop.permute.xlu0 %1751
    %v1753 = vsel %vm197, %v1752, 0
    %1755 = vmatprep.subr.mxu0 0.0
    %1756 = vmatpush1.msra.mxu0 %v1742
    %1757 = vmatprep.subr.mxu0 0.0
    %1758 = vmatpush1.msra.mxu0 %v1743
    %1759 = vmatprep.subr.mxu0 0.0
    %1760 = vmatpush1.msra.mxu0 %v1744
    %1761 = vmatprep.subr.mxu0 0.0
    %1762 = vmatpush1.msra.mxu0 %v1745
    %1763 = vmatprep.subr.mxu0 0.0
    %1764 = vmatpush1.msra.mxu0 0.0
    %1765 = vmatprep.subr.mxu0 0.0
    %1766 = vmatpush1.msra.mxu0 0.0
    %1767 = vmatprep.subr.mxu0 0.0
    %1768 = vmatpush1.msra.mxu0 0.0
    %1769 = vmatprep.subr.mxu0 0.0
    %1770 = vmatpush1.msra.mxu0 0.0
    %1771 = vmatprep.subr.mxu0 0.0
    %1772 = vmatpush1.msra.mxu0 0.0
    %1773 = vmatprep.subr.mxu0 0.0
    %1774 = vmatpush1.msra.mxu0 0.0
    %1775 = vmatprep.subr.mxu0 0.0
    %1776 = vmatpush1.msra.mxu0 0.0
    %1777 = vmatprep.subr.mxu0 0.0
    %1778 = vmatpush1.msra.mxu0 0.0
    %1779 = vmatprep.subr.mxu0 0.0
    %1780 = vmatpush1.msra.mxu0 0.0
    %1781 = vmatprep.subr.mxu0 0.0
    %1782 = vmatpush1.msra.mxu0 0.0
    %1783 = vmatprep.subr.mxu0 0.0
    %1784 = vmatpush1.msra.mxu0 0.0
    %1785 = vmatprep.subr.mxu0 0.0
    %1786 = vmatpush1.msra.mxu0 0.0
    %1787 = vmatprep.subr.mxu0 0.0
    %1788 = vmatpush1.msra.mxu0 0.0
    %1789 = vmatprep.subr.mxu0 0.0
    %1790 = vmatpush1.msra.mxu0 0.0
    %1791 = vmatprep.subr.mxu0 0.0
    %1792 = vmatpush1.msra.mxu0 0.0
    %1793 = vmatprep.subr.mxu0 0.0
    %1794 = vmatpush1.msra.mxu0 0.0
    %1795 = vmatprep.subr.mxu0 0.0
    %1796 = vmatpush1.msra.mxu0 0.0
    %1797 = vmatprep.subr.mxu0 0.0
    %1798 = vmatpush1.msra.mxu0 0.0
    %1799 = vmatprep.subr.mxu0 0.0
    %1800 = vmatpush1.msra.mxu0 0.0
    %1801 = vmatprep.subr.mxu0 0.0
    %1802 = vmatpush1.msra.mxu0 0.0
    %1803 = vmatprep.subr.mxu0 0.0
    %1804 = vmatpush1.msra.mxu0 0.0
    %1805 = vmatprep.subr.mxu0 0.0
    %1806 = vmatpush1.msra.mxu0 0.0
    %1807 = vmatprep.subr.mxu0 0.0
    %1808 = vmatpush1.msra.mxu0 0.0
    %1809 = vmatprep.subr.mxu0 0.0
    %1810 = vmatpush1.msra.mxu0 0.0
    %1811 = vmatprep.subr.mxu0 0.0
    %1812 = vmatpush1.msra.mxu0 0.0
    %1813 = vmatprep.subr.mxu0 0.0
    %1814 = vmatpush1.msra.mxu0 0.0
    %1815 = vmatprep.subr.mxu0 0.0
    %1816 = vmatpush1.msra.mxu0 0.0
    %1817 = vmatprep.subr.mxu0 0.0
    %1818 = vmatpush1.msra.mxu0 0.0
    %1819 = vmatprep.mubr.f32.mxu0 0.0
    %1820 = vmatmul.mubr.f32.gmra.mrb[0].mxu0 %v1753
    %v1821 = vpop.f32.mrb[0].mxu0
    %v1822 = vadd.f32 %v1749, %v1821
    %v1823 = vpop.f32.mrb[0].mxu0
    %1824 = vdwg.mxu0
    %v1825 = vmax.f32 %v1822, 0.0
    %v1826 = vadd.f32 %v1739, 1.0
    %v1827 = vmul.f32 %v1825, %v1826
    %1829 = vrot.lane.b32.xlu0 %v1739, 96
    %v1830 = vpop.permute.xlu0 %1829
    %v1832 = vadd.f32 %v1827, %v1830
    %v1833 = vld [vmem:[#allocation8] sm:$0xff]
    %v1834 = vld [vmem:[#allocation8 + $0x8] sm:$0xff]
    %v1835 = vld [vmem:[#allocation8 + $0x10] sm:$0xff]
    %v1836 = vld [vmem:[#allocation8 + $0x18] sm:$0xff]
    %v1837 = vld [vmem:[#allocation8 + $0x20] sm:$0xff]
    %v1838 = vld [vmem:[#allocation8 + $0x28] sm:$0xff]
    %v1839 = vld [vmem:[#allocation8 + $0x30] sm:$0xff]
    %v1840 = vld [vmem:[#allocation8 + $0x38] sm:$0xff]
    %v1841 = vld [vmem:[#allocation8 + $0x40] sm:$0xff]
    %v1842 = vld [vmem:[#allocation8 + $0x48] sm:$0xff]
    %v1843 = vld [vmem:[#allocation8 + $0x50] sm:$0xff]
    %v1844 = vld [vmem:[#allocation8 + $0x58] sm:$0xff]
    %v1845 = vld [vmem:[%s9] sm:$0xf]
    %v1846 = vlaneseq
    %v1847 = vshrl.u32 %v1846, 7
    %v1848 = vsub.s32 0, %v1847
    %v1849 = vrot.slane %v1845, %v1848
    %v1851 = vsel %vm197, %v1832, 0
    %1853 = vmatprep.subr.mxu0 0.0
    %1854 = vmatpush1.msra.mxu0 %v1833
    %1855 = vmatprep.subr.mxu0 0.0
    %1856 = vmatpush1.msra.mxu0 %v1834
    %1857 = vmatprep.subr.mxu0 0.0
    %1858 = vmatpush1.msra.mxu0 %v1835
    %1859 = vmatprep.subr.mxu0 0.0
    %1860 = vmatpush1.msra.mxu0 %v1836
    %1861 = vmatprep.subr.mxu0 0.0
    %1862 = vmatpush1.msra.mxu0 0.0
    %1863 = vmatprep.subr.mxu0 0.0
    %1864 = vmatpush1.msra.mxu0 0.0
    %1865 = vmatprep.subr.mxu0 0.0
    %1866 = vmatpush1.msra.mxu0 0.0
    %1867 = vmatprep.subr.mxu0 0.0
    %1868 = vmatpush1.msra.mxu0 0.0
    %1869 = vmatprep.subr.mxu0 0.0
    %1870 = vmatpush1.msra.mxu0 0.0
    %1871 = vmatprep.subr.mxu0 0.0
    %1872 = vmatpush1.msra.mxu0 0.0
    %1873 = vmatprep.subr.mxu0 0.0
    %1874 = vmatpush1.msra.mxu0 0.0
    %1875 = vmatprep.subr.mxu0 0.0
    %1876 = vmatpush1.msra.mxu0 0.0
    %1877 = vmatprep.subr.mxu0 0.0
    %1878 = vmatpush1.msra.mxu0 0.0
    %1879 = vmatprep.subr.mxu0 0.0
    %1880 = vmatpush1.msra.mxu0 0.0
    %1881 = vmatprep.subr.mxu0 0.0
    %1882 = vmatpush1.msra.mxu0 0.0
    %1883 = vmatprep.subr.mxu0 0.0
    %1884 = vmatpush1.msra.mxu0 0.0
    %1885 = vmatprep.subr.mxu0 0.0
    %1886 = vmatpush1.msra.mxu0 0.0
    %1887 = vmatprep.subr.mxu0 0.0
    %1888 = vmatpush1.msra.mxu0 0.0
    %1889 = vmatprep.subr.mxu0 0.0
    %1890 = vmatpush1.msra.mxu0 0.0
    %1891 = vmatprep.subr.mxu0 0.0
    %1892 = vmatpush1.msra.mxu0 0.0
    %1893 = vmatprep.subr.mxu0 0.0
    %1894 = vmatpush1.msra.mxu0 0.0
    %1895 = vmatprep.subr.mxu0 0.0
    %1896 = vmatpush1.msra.mxu0 0.0
    %1897 = vmatprep.subr.mxu0 0.0
    %1898 = vmatpush1.msra.mxu0 0.0
    %1899 = vmatprep.subr.mxu0 0.0
    %1900 = vmatpush1.msra.mxu0 0.0
    %1901 = vmatprep.subr.mxu0 0.0
    %1902 = vmatpush1.msra.mxu0 0.0
    %1903 = vmatprep.subr.mxu0 0.0
    %1904 = vmatpush1.msra.mxu0 0.0
    %1905 = vmatprep.subr.mxu0 0.0
    %1906 = vmatpush1.msra.mxu0 0.0
    %1907 = vmatprep.subr.mxu0 0.0
    %1908 = vmatpush1.msra.mxu0 0.0
    %1909 = vmatprep.subr.mxu0 0.0
    %1910 = vmatpush1.msra.mxu0 0.0
    %1911 = vmatprep.subr.mxu0 0.0
    %1912 = vmatpush1.msra.mxu0 0.0
    %1913 = vmatprep.subr.mxu0 0.0
    %1914 = vmatpush1.msra.mxu0 0.0
    %1915 = vmatprep.subr.mxu0 0.0
    %1916 = vmatpush1.msra.mxu0 0.0
    %1917 = vmatprep.mubr.f32.mxu0 0.0
    %1918 = vmatmul.mubr.f32.gmra.mrb[0].mxu0 %v1851
    %v1919 = vpop.f32.mrb[0].mxu0
    %v1920 = vadd.f32 %v1849, %v1919
    %v1921 = vpop.f32.mrb[0].mxu0
    %1922 = vdwg.mxu0
    %vm1923 = vcmask 519168
    %v1924 = vsel %vm1923, %v1920, 0.0
    %v1925 = vrot.slane %v1924, 4
    %v1926 = vadd.f32 %v1924, %v1925
    %v1927 = vrot.slane %v1926, 2
    %v1928 = vadd.f32 %v1926, %v1927
    %v1929 = vrot.slane %v1928, 1
    %v1930 = vadd.f32 %v1928, %v1929
    %v1931 = vrcp.pop 4.0
    %v1932 = vmul.f32 %v1930, %v1931
    %v1933 = vmul.f32 %v1920, %v1920
    %v1934 = vsel %vm1923, %v1933, 0.0
    %v1935 = vrot.slane %v1934, 4
    %v1936 = vadd.f32 %v1934, %v1935
    %v1937 = vrot.slane %v1936, 2
    %v1938 = vadd.f32 %v1936, %v1937
    %v1939 = vrot.slane %v1938, 1
    %v1940 = vadd.f32 %v1938, %v1939
    %v1941 = vmul.f32 %v1940, %v1931
    %v1942 = vmul.f32 %v1932, %v1932
    %v1943 = vsub.f32 %v1941, %v1942
    %v1944 = vsub.f32 %v1920, %v1932
    %v1945 = vadd.f32 %v1943, 1e-05
    %v1946 = vrsqrt.pop %v1945
    %v1947 = vmul.f32 %v1944, %v1946
    %v1948 = vlaneseq
    %v1949 = vshrl.u32 %v1948, 7
    %v1950 = vsub.s32 1, %v1949
    %v1951 = vrot.slane %v1845, %v1950
    %v1952 = vmul.f32 %v1947, %v1951
    %v1953 = vlaneseq
    %v1954 = vshrl.u32 %v1953, 7
    %v1955 = vsub.s32 2, %v1954
    %v1956 = vrot.slane %v1845, %v1955
    %v1957 = vadd.f32 %v1952, %v1956
    %v1958 = vmax.f32 %v1957, 0.0
    %v1959 = vlaneseq
    %v1960 = vshrl.u32 %v1959, 7
    %v1961 = vsub.s32 3, %v1960
    %v1962 = vrot.slane %v1845, %v1961
    %v1964 = vsel %vm400, %v1958, 0
    %1966 = vmatprep.subr.mxu0 0.0
    %1967 = vmatpush1.msra.mxu0 %v1837
    %1968 = vmatprep.subr.mxu0 0.0
    %1969 = vmatpush1.msra.mxu0 %v1838
    %1970 = vmatprep.subr.mxu0 0.0
    %1971 = vmatpush1.msra.mxu0 %v1839
    %1972 = vmatprep.subr.mxu0 0.0
    %1973 = vmatpush1.msra.mxu0 %v1840
    %1974 = vmatprep.subr.mxu0 0.0
    %1975 = vmatpush1.msra.mxu0 %v1841
    %1976 = vmatprep.subr.mxu0 0.0
    %1977 = vmatpush1.msra.mxu0 %v1842
    %1978 = vmatprep.subr.mxu0 0.0
    %1979 = vmatpush1.msra.mxu0 %v1843
    %1980 = vmatprep.subr.mxu0 0.0
    %1981 = vmatpush1.msra.mxu0 %v1844
    %1982 = vmatprep.subr.mxu0 0.0
    %1983 = vmatpush1.msra.mxu0 0.0
    %1984 = vmatprep.subr.mxu0 0.0
    %1985 = vmatpush1.msra.mxu0 0.0
    %1986 = vmatprep.subr.mxu0 0.0
    %1987 = vmatpush1.msra.mxu0 0.0
    %1988 = vmatprep.subr.mxu0 0.0
    %1989 = vmatpush1.msra.mxu0 0.0
    %1990 = vmatprep.subr.mxu0 0.0
    %1991 = vmatpush1.msra.mxu0 0.0
    %1992 = vmatprep.subr.mxu0 0.0
    %1993 = vmatpush1.msra.mxu0 0.0
    %1994 = vmatprep.subr.mxu0 0.0
    %1995 = vmatpush1.msra.mxu0 0.0
    %1996 = vmatprep.subr.mxu0 0.0
    %1997 = vmatpush1.msra.mxu0 0.0
    %1998 = vmatprep.subr.mxu0 0.0
    %1999 = vmatpush1.msra.mxu0 0.0
    %2000 = vmatprep.subr.mxu0 0.0
    %2001 = vmatpush1.msra.mxu0 0.0
    %2002 = vmatprep.subr.mxu0 0.0
    %2003 = vmatpush1.msra.mxu0 0.0
    %2004 = vmatprep.subr.mxu0 0.0
    %2005 = vmatpush1.msra.mxu0 0.0
    %2006 = vmatprep.subr.mxu0 0.0
    %2007 = vmatpush1.msra.mxu0 0.0
    %2008 = vmatprep.subr.mxu0 0.0
    %2009 = vmatpush1.msra.mxu0 0.0
    %2010 = vmatprep.subr.mxu0 0.0
    %2011 = vmatpush1.msra.mxu0 0.0
    %2012 = vmatprep.subr.mxu0 0.0
    %2013 = vmatpush1.msra.mxu0 0.0
    %2014 = vmatprep.subr.mxu0 0.0
    %2015 = vmatpush1.msra.mxu0 0.0
    %2016 = vmatprep.subr.mxu0 0.0
    %2017 = vmatpush1.msra.mxu0 0.0
    %2018 = vmatprep.subr.mxu0 0.0
    %2019 = vmatpush1.msra.mxu0 0.0
    %2020 = vmatprep.subr.mxu0 0.0
    %2021 = vmatpush1.msra.mxu0 0.0
    %2022 = vmatprep.subr.mxu0 0.0
    %2023 = vmatpush1.msra.mxu0 0.0
    %2024 = vmatprep.subr.mxu0 0.0
    %2025 = vmatpush1.msra.mxu0 0.0
    %2026 = vmatprep.subr.mxu0 0.0
    %2027 = vmatpush1.msra.mxu0 0.0
    %2028 = vmatprep.subr.mxu0 0.0
    %2029 = vmatpush1.msra.mxu0 0.0
    %2030 = vmatprep.mubr.f32.mxu0 0.0
    %2031 = vmatmul.mubr.f32.gmra.mrb[0].mxu0 %v1964
    %v2032 = vpop.f32.mrb[0].mxu0
    %v2033 = vadd.f32 %v1962, %v2032
    %v2034 = vpop.f32.mrb[0].mxu0
    %2035 = vdwg.mxu0
    %v2036 = vlaneseq
    %v2037 = vand.u32 %v2036, 127
    %vm2038 = vcmp.lt.s32.totalorder %v2037, 8
    %v2039 = vsel %vm2038, %v2033, 0.0
    %v2040 = vmul.f32 %v2039, %v2039
    %vm2041 = vcmask 1043456
    %v2042 = vsel %vm2041, %v2040, 0.0
    %2043 = vadd.xlane.f32.xlu0 %v2042
    %v2044 = vpop.xlane.xlu0 %2043
    %v2045 = vmax.f32 %v2044, 1e-24
    %v2046 = vrsqrt.pop %v2045
    %v2047 = vmul.f32 %v2033, %v2046
    %vm2048 = vcmp.eq.s32.totalorder %v2037, 8
    %v2049 = vxor.u32 %v2033, 2147483648
    %v2050 = vmul.f32 %v2049, 1.442695
    %v2051 = vpow.pop %v2050
    %v2052 = vadd.f32 %v2051, 1.0
    %v2053 = vrcp.pop %v2052
    %v2054 = vmul.f32 1.0, %v2053
    %v2055 = vsel %vm2048, %v2054, 0.0
    %v2056 = vsel %vm2038, %v2047, %v2055
    %2057 = vst [vmem:[#allocation10] sm:$0xf] %v2056
    // Predicated region
    $region58: #{tpu_custom_call.1} parent=1 // pred_check
      _
    $region59: #{tpu_custom_call.1} parent=1 // pred_check_branch
      %2059 = sbr.rel (0) target = $region61
    $region60: #{tpu_custom_call.1} parent=1 // pred_region
      %s2061 = ssub.s32 64, 64
      %2062 = vsyncadd [#allocation4], %s2061
      %s2064 = sshll.u32 [#allocation10], 4
      %s2065 = int_to_ptr.vmem [resolvable:$true] %s2064
      %2067 = dma.vmem_to_hbm [thread:$0]  %s2065, 64, %s10, [#allocation4]
    $region61: #{tpu_custom_call.1} parent=1 // pred_fallthru
      _
    // Predicated region
    $region62: #{tpu_custom_call.1} parent=1 // pred_check
      _
    $region63: #{tpu_custom_call.1} parent=1 // pred_check_branch
      %2069 = sbr.rel (0) target = $region65
    $region64: #{tpu_custom_call.1} parent=1 // pred_region
      %2070 = dma.done [#allocation4], 64
    $region65: #{tpu_custom_call.1} parent=1 // pred_fallthru
      _
    %2071 = vsyncpa [#allocation3], 1
    %2072 = vsyncpa [#allocation6], 1
    %2073 = vsyncpa [#allocation9], 1
    %2074 = vsyncpa [#allocation4], 1

</llo_original>
